<compile_context>
chip_gen: v7x
topology: tpu7x:2x2x1
jax: 0.10.0
libtpu: 0.0.40
codegen_flags: <defaults>
</compile_context>

<pallas_src>
import jax
import jax.numpy as jnp
from jax.experimental import pallas as pl
from jax.experimental.pallas import tpu as pltpu


_VMEM_SPEC = pl.BlockSpec(memory_space=pltpu.MemorySpace.VMEM)
_LN_EPS = 1e-5


# ---------------------------------------------------------------------------
# Fused whole-network kernel
# ---------------------------------------------------------------------------
def _make_fused_kernel(nb_layers):
    """Kernel closure for `nb_layers` GNN layers + readout.

    Ref order:
      x (N, F_in) f32
      A (N, N) bf16
      slab (nb+3, H) f32:
          rows 0..nb-1 : folded per-layer biases
          row  nb      : folded readout weight for y   (1, H)
          row  nb+1    : readout weight for h          (1, H)
          row  nb+2    : [b_out, 0, 0, ...]            (folded output bias)
      weight mats (bf16): W0 (F_in,H), W1 (H,H), then (Wy_i, Wh_i) for i>=2
      o_ref (N, 1) f32
    """
    assert nb_layers >= 2, "VariablePredictor requires at least 2 GNN layers"

    def kernel(*refs):
        o_ref = refs[-1]
        x_ref, a_ref, slab_ref = refs[0], refs[1], refs[2]
        w_refs = refs[3:-1]

        slab = slab_ref[...]          # (nb+3, H) f32, single VMEM tile
        a_bf = a_ref[...]             # (N, N) bf16

        wi = 0
        y = None                      # f32 LN output (affine folded downstream)
        y_bf = None
        h = None                      # f32 ReLU output of the current layer
        h_bf = None
        for i in range(nb_layers):
            # ---- simpleMLP: Linear (bf16 MXU, f32 acc) + ReLU (f32 VPU) ----
            if i == 0:
                z = jnp.dot(x_ref[...].astype(jnp.bfloat16), w_refs[wi][...],
                            preferred_element_type=jnp.float32)
                wi += 1
            elif i == 1:
                z = jnp.dot(y_bf, w_refs[wi][...],
                            preferred_element_type=jnp.float32)
                wi += 1
            else:
                # cat([y, h], 1) @ W  ==  y @ W[:H] + h @ W[H:]
                z = (jnp.dot(y_bf, w_refs[wi][...],
                             preferred_element_type=jnp.float32)
                     + jnp.dot(h_bf, w_refs[wi + 1][...],
                               preferred_element_type=jnp.float32))
                wi += 2
            b = slab[i:i + 1, :]                          # (1, H) folded bias
            h = jnp.maximum(z + b, 0.0)                   # (N, H) f32
            h_bf = h.astype(jnp.bfloat16)

            # ---- graph propagation (bf16 MXU) + LayerNorm core (f32) -------
            ax = jnp.dot(a_bf, h_bf, preferred_element_type=jnp.float32)
            mean = jnp.mean(ax, axis=-1, keepdims=True)
            cen = ax - mean
            var = jnp.mean(cen * cen, axis=-1, keepdims=True)
            y = cen * jax.lax.rsqrt(var + _LN_EPS)        # gamma/beta folded out
            y_bf = y.astype(jnp.bfloat16)

        # ---- readout: sigmoid(cat([y, h]) @ w_out + b_out) -----------------
        # VPU multiply + lane reduce (no (2H,1) MXU matmul); all in f32.
        w_out_y = slab[nb_layers:nb_layers + 1, :]        # (1, H) gamma-folded
        w_out_h = slab[nb_layers + 1:nb_layers + 2, :]    # (1, H)
        b_out = slab[nb_layers + 2:nb_layers + 3, 0:1]    # (1, 1) beta-folded
        z = jnp.sum(y * w_out_y + h * w_out_h, axis=-1, keepdims=True) + b_out
        o_ref[...] = jax.nn.sigmoid(z).astype(o_ref.dtype)

    return kernel


# ---------------------------------------------------------------------------
# Parameter setup (matches the PyTorch module's structure; LN affine is
# randomized slightly so the host-side folding is actually exercised).
# ---------------------------------------------------------------------------
def init_params(key, input_size, hidden_size, nb_mlp):
    layer_dims = ([(input_size, hidden_size), (hidden_size, hidden_size)]
                  + [(hidden_size * 2, hidden_size)] * (nb_mlp - 2))
    params = {"mlp": [], "ln": []}
    for fan_in, fan_out in layer_dims:
        key, k1, k2, k3, k4 = jax.random.split(key, 5)
        bound = 1.0 / float(fan_in) ** 0.5
        w = jax.random.uniform(k1, (fan_in, fan_out), jnp.float32, -bound, bound)
        b = jax.random.uniform(k2, (1, fan_out), jnp.float32, -bound, bound)
        params["mlp"].append((w, b))
        gamma = 1.0 + 0.1 * jax.random.normal(k3, (1, hidden_size), jnp.float32)
        beta = 0.1 * jax.random.normal(k4, (1, hidden_size), jnp.float32)
        params["ln"].append((gamma, beta))
    key, k1, k2 = jax.random.split(key, 3)
    fan_in = hidden_size * 2
    bound = 1.0 / float(fan_in) ** 0.5
    params["out"] = (jax.random.uniform(k1, (fan_in, 1), jnp.float32, -bound, bound),
                     jax.random.uniform(k2, (1, 1), jnp.float32, -bound, bound))
    return params


# ---------------------------------------------------------------------------
# Forward pass: host-side algebra (concat-split + LN folding) + one pallas_call
# ---------------------------------------------------------------------------
def variable_predictor(params, x, a):
    nb = len(params["mlp"])
    assert nb >= 2
    hidden = params["ln"][0][0].shape[-1]
    n = x.shape[0]

    # ---- fold LN affine of layer i-1 into layer i's y-weight / bias --------
    mats = []       # bf16 matmul operands (one per layer, two for i >= 2)
    biases = []     # f32 (1, H) folded biases
    for i in range(nb):
        w, b = params["mlp"][i]
        if i == 0:
            mats.append(w)
            biases.append(b)
        else:
            gamma_p, beta_p = params["ln"][i - 1]
            wy = w[:hidden]                                  # (H, H)
            wy_folded = wy * gamma_p.reshape(hidden, 1)      # row-scale by gamma
            biases.append(b + beta_p @ wy)                   # bias shift by beta
            mats.append(wy_folded)
            if i >= 2:
                mats.append(w[hidden:])                      # h-half, unchanged

    # ---- fold last layer's LN affine into the readout -----------------------
    w_out, b_out = params["out"]                             # (2H, 1), (1, 1)
    gamma_l, beta_l = params["ln"][nb - 1]
    w_out_y = (w_out[:hidden] * gamma_l.reshape(hidden, 1)).T    # (1, H)
    w_out_h = w_out[hidden:].T                                   # (1, H)
    b_out_f = b_out + beta_l @ w_out[:hidden]                    # (1, 1)

    # ---- pack every tiny (1, H) parameter into one slab (single VMEM tile) --
    b_out_row = jnp.concatenate(
        [b_out_f, jnp.zeros((1, hidden - 1), jnp.float32)], axis=1)
    slab = jnp.concatenate(biases + [w_out_y, w_out_h, b_out_row],
                           axis=0).astype(jnp.float32)          # (nb+3, H)

    flat = ([x, a.astype(jnp.bfloat16), slab]
            + [m.astype(jnp.bfloat16) for m in mats])

    # ---- VMEM residency guard (v7x has only 64 MiB physical VMEM) ----------
    footprint = sum(int(v.size) * v.dtype.itemsize for v in flat)
    footprint += n * 4                      # output
    footprint += 6 * n * hidden * 4         # rough live activation set (f32)
    assert footprint < 48 * 1024 * 1024, (
        "whole-array-resident footprint too large for VMEM; "
        "TODO(synk): use the gridded (row-tile, K-last) design for large N")
    vmem_limit = int(min(64 * 1024 * 1024, max(4 * footprint, 16 * 1024 * 1024)))

    return pl.pallas_call(
        _make_fused_kernel(nb),
        out_shape=jax.ShapeDtypeStruct((n, 1), jnp.float32),
        in_specs=[_VMEM_SPEC] * len(flat),
        out_specs=_VMEM_SPEC,
        compiler_params=pltpu.CompilerParams(vmem_limit_bytes=vmem_limit),
    )(*flat)


# ---------------------------------------------------------------------------
# Pure-JAX f32 reference (matches the PyTorch forward exactly, concat and all)
# ---------------------------------------------------------------------------
def variable_predictor_ref(params, x, a):
    nb = len(params["mlp"])
    for i in range(nb):
        w, b = params["mlp"][i]
        gamma, beta = params["ln"][i]
        h = jnp.maximum(x @ w + b, 0.0)
        ax = a @ h
        mean = ax.mean(-1, keepdims=True)
        var = ((ax - mean) ** 2).mean(-1, keepdims=True)
        y = (ax - mean) / jnp.sqrt(var + _LN_EPS) * gamma + beta
        x = y if i == 0 else jnp.concatenate([y, h], axis=1)
    w, b = params["out"]
    return jax.nn.sigmoid(x @ w + b)


if __name__ == "__main__":
    # Small but MXU/lane-friendly: H=128 fills all 128 lanes, N=128 fills the
    # MXU row dimension on v5e (half-fill on v6e/v7x) and every f32 sublane.
    N, INPUT_SIZE, HIDDEN, NB_MLP = 128, 16, 128, 3

    key = jax.random.PRNGKey(0)
    key, kx, ka = jax.random.split(key, 3)
    x = jax.random.normal(kx, (N, INPUT_SIZE), jnp.float32)
    a = jax.random.uniform(ka, (N, N), jnp.float32)   # dense "adjacency"

    params = init_params(key, INPUT_SIZE, HIDDEN, NB_MLP)

    fwd = jax.jit(variable_predictor)
    out = jax.block_until_ready(fwd(params, x, a))

    ref = variable_predictor_ref(params, x, a)
    assert out.shape == (N, 1)
    err = float(jnp.max(jnp.abs(out - ref)))
    # Tolerance loosened for bf16 MXU operands (f32 accumulation).
    assert jnp.allclose(out, ref, atol=2e-2, rtol=2e-2), err

    print("KERNEL_OK")
</pallas_src>

<mosaic_0001>
module attributes {stable_mosaic.version = 11 : i64} {
  func.func @kernel(%arg0: memref<128x16xf32, #tpu.memory_space<vmem>>, %arg1: memref<128x128xbf16, #tpu.memory_space<vmem>>, %arg2: memref<6x128xf32, #tpu.memory_space<vmem>>, %arg3: memref<16x128xbf16, #tpu.memory_space<vmem>>, %arg4: memref<128x128xbf16, #tpu.memory_space<vmem>>, %arg5: memref<128x128xbf16, #tpu.memory_space<vmem>>, %arg6: memref<128x128xbf16, #tpu.memory_space<vmem>>, %arg7: memref<128x1xf32, #tpu.memory_space<vmem>>) attributes {dimension_semantics = [], scalar_prefetch = 0 : i64, scratch_operands = 0 : i64, tpu.core_type = #tpu.core_type<tc>} {
    %c0 = arith.constant 0 : index
    %c0_0 = arith.constant 0 : index
    %0 = vector.load %arg2[%c0, %c0_0] : memref<6x128xf32, #tpu.memory_space<vmem>>, vector<6x128xf32>
    %c0_1 = arith.constant 0 : index
    %c0_2 = arith.constant 0 : index
    %1 = vector.load %arg1[%c0_1, %c0_2] : memref<128x128xbf16, #tpu.memory_space<vmem>>, vector<128x128xbf16>
    %c0_3 = arith.constant 0 : index
    %c0_4 = arith.constant 0 : index
    %2 = vector.load %arg0[%c0_3, %c0_4] : memref<128x16xf32, #tpu.memory_space<vmem>>, vector<128x16xf32>
    %3 = arith.truncf %2 : vector<128x16xf32> to vector<128x16xbf16>
    %c0_5 = arith.constant 0 : index
    %c0_6 = arith.constant 0 : index
    %4 = vector.load %arg3[%c0_5, %c0_6] : memref<16x128xbf16, #tpu.memory_space<vmem>>, vector<16x128xbf16>
    %cst = arith.constant dense<0.000000e+00> : vector<128x128xf32>
    %5 = tpu.matmul %3, %4, %cst {dimension_numbers = #tpu.dot_dimension_numbers<[1], [0], [0], [1], [0, 0, 1, 1], [], []>} : vector<128x16xbf16>, vector<16x128xbf16>, vector<128x128xf32> -> vector<128x128xf32>
    %6 = vector.extract_strided_slice %0 {offsets = [0, 0], sizes = [1, 128], strides = [1, 1]} : vector<6x128xf32> to vector<1x128xf32>
    %7 = vector.broadcast %6 : vector<1x128xf32> to vector<128x128xf32>
    %8 = arith.addf %5, %7 : vector<128x128xf32>
    %cst_7 = arith.constant 0.000000e+00 : f32
    %9 = vector.broadcast %cst_7 : f32 to vector<128x128xf32>
    %10 = arith.maximumf %8, %9 : vector<128x128xf32>
    %11 = arith.truncf %10 : vector<128x128xf32> to vector<128x128xbf16>
    %cst_8 = arith.constant dense<0.000000e+00> : vector<128x128xf32>
    %12 = tpu.matmul %1, %11, %cst_8 {dimension_numbers = #tpu.dot_dimension_numbers<[1], [0], [0], [1], [0, 0, 1, 1], [], []>} : vector<128x128xbf16>, vector<128x128xbf16>, vector<128x128xf32> -> vector<128x128xf32>
    %cst_9 = arith.constant dense<0.000000e+00> : vector<128xf32>
    %13 = vector.multi_reduction <add>, %12, %cst_9 [1] : vector<128x128xf32> to vector<128xf32>
    %14 = vector.shape_cast %13 : vector<128xf32> to vector<128x1xf32>
    %cst_10 = arith.constant 1.280000e+02 : f32
    %15 = vector.broadcast %cst_10 : f32 to vector<128x1xf32>
    %16 = arith.divf %14, %15 : vector<128x1xf32>
    %17 = vector.broadcast %16 : vector<128x1xf32> to vector<128x128xf32>
    %18 = arith.subf %12, %17 : vector<128x128xf32>
    %19 = arith.mulf %18, %18 : vector<128x128xf32>
    %cst_11 = arith.constant dense<0.000000e+00> : vector<128xf32>
    %20 = vector.multi_reduction <add>, %19, %cst_11 [1] : vector<128x128xf32> to vector<128xf32>
    %21 = vector.shape_cast %20 : vector<128xf32> to vector<128x1xf32>
    %cst_12 = arith.constant 1.280000e+02 : f32
    %22 = vector.broadcast %cst_12 : f32 to vector<128x1xf32>
    %23 = arith.divf %21, %22 : vector<128x1xf32>
    %cst_13 = arith.constant 9.99999974E-6 : f32
    %24 = vector.broadcast %cst_13 : f32 to vector<128x1xf32>
    %25 = arith.addf %23, %24 : vector<128x1xf32>
    %26 = math.rsqrt %25 : vector<128x1xf32>
    %27 = vector.broadcast %26 : vector<128x1xf32> to vector<128x128xf32>
    %28 = arith.mulf %18, %27 : vector<128x128xf32>
    %29 = arith.truncf %28 : vector<128x128xf32> to vector<128x128xbf16>
    %c0_14 = arith.constant 0 : index
    %c0_15 = arith.constant 0 : index
    %30 = vector.load %arg4[%c0_14, %c0_15] : memref<128x128xbf16, #tpu.memory_space<vmem>>, vector<128x128xbf16>
    %cst_16 = arith.constant dense<0.000000e+00> : vector<128x128xf32>
    %31 = tpu.matmul %29, %30, %cst_16 {dimension_numbers = #tpu.dot_dimension_numbers<[1], [0], [0], [1], [0, 0, 1, 1], [], []>} : vector<128x128xbf16>, vector<128x128xbf16>, vector<128x128xf32> -> vector<128x128xf32>
    %32 = vector.extract_strided_slice %0 {offsets = [1, 0], sizes = [1, 128], strides = [1, 1]} : vector<6x128xf32> to vector<1x128xf32>
    %33 = vector.broadcast %32 : vector<1x128xf32> to vector<128x128xf32>
    %34 = arith.addf %31, %33 : vector<128x128xf32>
    %cst_17 = arith.constant 0.000000e+00 : f32
    %35 = vector.broadcast %cst_17 : f32 to vector<128x128xf32>
    %36 = arith.maximumf %34, %35 : vector<128x128xf32>
    %37 = arith.truncf %36 : vector<128x128xf32> to vector<128x128xbf16>
    %cst_18 = arith.constant dense<0.000000e+00> : vector<128x128xf32>
    %38 = tpu.matmul %1, %37, %cst_18 {dimension_numbers = #tpu.dot_dimension_numbers<[1], [0], [0], [1], [0, 0, 1, 1], [], []>} : vector<128x128xbf16>, vector<128x128xbf16>, vector<128x128xf32> -> vector<128x128xf32>
    %cst_19 = arith.constant dense<0.000000e+00> : vector<128xf32>
    %39 = vector.multi_reduction <add>, %38, %cst_19 [1] : vector<128x128xf32> to vector<128xf32>
    %40 = vector.shape_cast %39 : vector<128xf32> to vector<128x1xf32>
    %cst_20 = arith.constant 1.280000e+02 : f32
    %41 = vector.broadcast %cst_20 : f32 to vector<128x1xf32>
    %42 = arith.divf %40, %41 : vector<128x1xf32>
    %43 = vector.broadcast %42 : vector<128x1xf32> to vector<128x128xf32>
    %44 = arith.subf %38, %43 : vector<128x128xf32>
    %45 = arith.mulf %44, %44 : vector<128x128xf32>
    %cst_21 = arith.constant dense<0.000000e+00> : vector<128xf32>
    %46 = vector.multi_reduction <add>, %45, %cst_21 [1] : vector<128x128xf32> to vector<128xf32>
    %47 = vector.shape_cast %46 : vector<128xf32> to vector<128x1xf32>
    %cst_22 = arith.constant 1.280000e+02 : f32
    %48 = vector.broadcast %cst_22 : f32 to vector<128x1xf32>
    %49 = arith.divf %47, %48 : vector<128x1xf32>
    %cst_23 = arith.constant 9.99999974E-6 : f32
    %50 = vector.broadcast %cst_23 : f32 to vector<128x1xf32>
    %51 = arith.addf %49, %50 : vector<128x1xf32>
    %52 = math.rsqrt %51 : vector<128x1xf32>
    %53 = vector.broadcast %52 : vector<128x1xf32> to vector<128x128xf32>
    %54 = arith.mulf %44, %53 : vector<128x128xf32>
    %55 = arith.truncf %54 : vector<128x128xf32> to vector<128x128xbf16>
    %c0_24 = arith.constant 0 : index
    %c0_25 = arith.constant 0 : index
    %56 = vector.load %arg5[%c0_24, %c0_25] : memref<128x128xbf16, #tpu.memory_space<vmem>>, vector<128x128xbf16>
    %cst_26 = arith.constant dense<0.000000e+00> : vector<128x128xf32>
    %57 = tpu.matmul %55, %56, %cst_26 {dimension_numbers = #tpu.dot_dimension_numbers<[1], [0], [0], [1], [0, 0, 1, 1], [], []>} : vector<128x128xbf16>, vector<128x128xbf16>, vector<128x128xf32> -> vector<128x128xf32>
    %c0_27 = arith.constant 0 : index
    %c0_28 = arith.constant 0 : index
    %58 = vector.load %arg6[%c0_27, %c0_28] : memref<128x128xbf16, #tpu.memory_space<vmem>>, vector<128x128xbf16>
    %cst_29 = arith.constant dense<0.000000e+00> : vector<128x128xf32>
    %59 = tpu.matmul %37, %58, %cst_29 {dimension_numbers = #tpu.dot_dimension_numbers<[1], [0], [0], [1], [0, 0, 1, 1], [], []>} : vector<128x128xbf16>, vector<128x128xbf16>, vector<128x128xf32> -> vector<128x128xf32>
    %60 = arith.addf %57, %59 : vector<128x128xf32>
    %61 = vector.extract_strided_slice %0 {offsets = [2, 0], sizes = [1, 128], strides = [1, 1]} : vector<6x128xf32> to vector<1x128xf32>
    %62 = vector.broadcast %61 : vector<1x128xf32> to vector<128x128xf32>
    %63 = arith.addf %60, %62 : vector<128x128xf32>
    %cst_30 = arith.constant 0.000000e+00 : f32
    %64 = vector.broadcast %cst_30 : f32 to vector<128x128xf32>
    %65 = arith.maximumf %63, %64 : vector<128x128xf32>
    %66 = arith.truncf %65 : vector<128x128xf32> to vector<128x128xbf16>
    %cst_31 = arith.constant dense<0.000000e+00> : vector<128x128xf32>
    %67 = tpu.matmul %1, %66, %cst_31 {dimension_numbers = #tpu.dot_dimension_numbers<[1], [0], [0], [1], [0, 0, 1, 1], [], []>} : vector<128x128xbf16>, vector<128x128xbf16>, vector<128x128xf32> -> vector<128x128xf32>
    %cst_32 = arith.constant dense<0.000000e+00> : vector<128xf32>
    %68 = vector.multi_reduction <add>, %67, %cst_32 [1] : vector<128x128xf32> to vector<128xf32>
    %69 = vector.shape_cast %68 : vector<128xf32> to vector<128x1xf32>
    %cst_33 = arith.constant 1.280000e+02 : f32
    %70 = vector.broadcast %cst_33 : f32 to vector<128x1xf32>
    %71 = arith.divf %69, %70 : vector<128x1xf32>
    %72 = vector.broadcast %71 : vector<128x1xf32> to vector<128x128xf32>
    %73 = arith.subf %67, %72 : vector<128x128xf32>
    %74 = arith.mulf %73, %73 : vector<128x128xf32>
    %cst_34 = arith.constant dense<0.000000e+00> : vector<128xf32>
    %75 = vector.multi_reduction <add>, %74, %cst_34 [1] : vector<128x128xf32> to vector<128xf32>
    %76 = vector.shape_cast %75 : vector<128xf32> to vector<128x1xf32>
    %cst_35 = arith.constant 1.280000e+02 : f32
    %77 = vector.broadcast %cst_35 : f32 to vector<128x1xf32>
    %78 = arith.divf %76, %77 : vector<128x1xf32>
    %cst_36 = arith.constant 9.99999974E-6 : f32
    %79 = vector.broadcast %cst_36 : f32 to vector<128x1xf32>
    %80 = arith.addf %78, %79 : vector<128x1xf32>
    %81 = math.rsqrt %80 : vector<128x1xf32>
    %82 = vector.broadcast %81 : vector<128x1xf32> to vector<128x128xf32>
    %83 = arith.mulf %73, %82 : vector<128x128xf32>
    %84 = vector.extract_strided_slice %0 {offsets = [3, 0], sizes = [1, 128], strides = [1, 1]} : vector<6x128xf32> to vector<1x128xf32>
    %85 = vector.extract_strided_slice %0 {offsets = [4, 0], sizes = [1, 128], strides = [1, 1]} : vector<6x128xf32> to vector<1x128xf32>
    %86 = vector.extract_strided_slice %0 {offsets = [5, 0], sizes = [1, 1], strides = [1, 1]} : vector<6x128xf32> to vector<1x1xf32>
    %87 = vector.broadcast %84 : vector<1x128xf32> to vector<128x128xf32>
    %88 = arith.mulf %83, %87 : vector<128x128xf32>
    %89 = vector.broadcast %85 : vector<1x128xf32> to vector<128x128xf32>
    %90 = arith.mulf %65, %89 : vector<128x128xf32>
    %91 = arith.addf %88, %90 : vector<128x128xf32>
    %cst_37 = arith.constant dense<0.000000e+00> : vector<128xf32>
    %92 = vector.multi_reduction <add>, %91, %cst_37 [1] : vector<128x128xf32> to vector<128xf32>
    %93 = vector.shape_cast %92 : vector<128xf32> to vector<128x1xf32>
    %94 = vector.broadcast %86 : vector<1x1xf32> to vector<128x1xf32>
    %95 = arith.addf %93, %94 : vector<128x1xf32>
    %96 = arith.negf %95 : vector<128x1xf32>
    %97 = math.exp %96 : vector<128x1xf32>
    %cst_38 = arith.constant 1.000000e+00 : f32
    %98 = vector.broadcast %cst_38 : f32 to vector<128x1xf32>
    %99 = arith.addf %98, %97 : vector<128x1xf32>
    %100 = arith.divf %98, %99 : vector<128x1xf32>
    %c0_39 = arith.constant 0 : index
    %c0_40 = arith.constant 0 : index
    %101 = vector.load %arg7[%c0_39, %c0_40] : memref<128x1xf32, #tpu.memory_space<vmem>>, vector<128x1xf32>
    tpu.vector_store %arg7[%c0_39, %c0_40], %100 {strides = array<i32>} : memref<128x1xf32, #tpu.memory_space<vmem>>, vector<128x1xf32>,
    return
  }
}

</mosaic_0001>

<llo_original>
// kernel: variable_predictor.1
$region0: #{variable_predictor.1}
  #allocation0 [shape = 'u32[]', space=smem, size = 0x4, offset = 0x4, fixed_abs, tag = 'smem constant byte address 0x4 - core index']
  #allocation1 [shape = 'u32[144,128]{1,0:T(1,128)}', space=vmem, size = 0x12000, scoped, tag = 'internal scratch']
  %s0 = inlined_call_operand.vmem [shape: f32[128,16], index: 0, kind: input, shape index: {}]
  %s1 = inlined_call_operand.vmem [shape: bf16[128,128], index: 1, kind: input, shape index: {}]
  %s2 = inlined_call_operand.vmem [shape: f32[6,128], index: 2, kind: input, shape index: {}]
  %s3 = inlined_call_operand.vmem [shape: bf16[16,128], index: 3, kind: input, shape index: {}]
  %s4 = inlined_call_operand.vmem [shape: bf16[128,128], index: 4, kind: input, shape index: {}]
  %s5 = inlined_call_operand.vmem [shape: bf16[128,128], index: 5, kind: input, shape index: {}]
  %s6 = inlined_call_operand.vmem [shape: bf16[128,128], index: 6, kind: input, shape index: {}]
  %s7 = inlined_call_operand.vmem [shape: f32[128,1], index: 7, kind: output, shape index: {}]
  %s8 = sld [smem:[#allocation0]]
  $region38: #{variable_predictor.1} parent=0
    _
  %s10 = ssub.s32 1, %s8
  %s11 = scalar_select 0, %s10, %s8
  // Predicated region
  $region2: #{variable_predictor.1} parent=0 // pred_check
    _
  $region3: #{variable_predictor.1} parent=0 // pred_check_branch
    %13 = sbr.rel (0) target = $region5
  $region4: #{variable_predictor.1} parent=0 // pred_region
    _
  $region5: #{variable_predictor.1} parent=0 // pred_fallthru
    _
  // Predicated region
  $region6: #{variable_predictor.1} parent=0 // pred_check
    _
  $region7: #{variable_predictor.1} parent=0 // pred_check_branch
    %15 = sbr.rel (0) target = $region9
  $region8: #{variable_predictor.1} parent=0 // pred_region
    _
  $region9: #{variable_predictor.1} parent=0 // pred_fallthru
    _
  // Predicated region
  $region10: #{variable_predictor.1} parent=0 // pred_check
    _
  $region11: #{variable_predictor.1} parent=0 // pred_check_branch
    %17 = sbr.rel (0) target = $region13
  $region12: #{variable_predictor.1} parent=0 // pred_region
    _
  $region13: #{variable_predictor.1} parent=0 // pred_fallthru
    _
  // Predicated region
  $region14: #{variable_predictor.1} parent=0 // pred_check
    _
  $region15: #{variable_predictor.1} parent=0 // pred_check_branch
    %19 = sbr.rel (0) target = $region17
  $region16: #{variable_predictor.1} parent=0 // pred_region
    _
  $region17: #{variable_predictor.1} parent=0 // pred_fallthru
    _
  // Predicated region
  $region18: #{variable_predictor.1} parent=0 // pred_check
    _
  $region19: #{variable_predictor.1} parent=0 // pred_check_branch
    %21 = sbr.rel (0) target = $region21
  $region20: #{variable_predictor.1} parent=0 // pred_region
    _
  $region21: #{variable_predictor.1} parent=0 // pred_fallthru
    _
  // Predicated region
  $region22: #{variable_predictor.1} parent=0 // pred_check
    _
  $region23: #{variable_predictor.1} parent=0 // pred_check_branch
    %23 = sbr.rel (0) target = $region25
  $region24: #{variable_predictor.1} parent=0 // pred_region
    _
  $region25: #{variable_predictor.1} parent=0 // pred_fallthru
    _
  // Predicated region
  $region26: #{variable_predictor.1} parent=0 // pred_check
    _
  $region27: #{variable_predictor.1} parent=0 // pred_check_branch
    %25 = sbr.rel (0) target = $region29
  $region28: #{variable_predictor.1} parent=0 // pred_region
    _
  $region29: #{variable_predictor.1} parent=0 // pred_fallthru
    _
  %v27 = vld [vmem:[%s2] sm:$0x3f]
  %v28 = vld [vmem:[%s1] sm:$0xf]
  %v29 = vld [vmem:[%s1 + $0x4] sm:$0xf]
  %v30 = vld [vmem:[%s1 + $0x8] sm:$0xf]
  %v31 = vld [vmem:[%s1 + $0xc] sm:$0xf]
  %v32 = vld [vmem:[%s1 + $0x10] sm:$0xf]
  %v33 = vld [vmem:[%s1 + $0x14] sm:$0xf]
  %v34 = vld [vmem:[%s1 + $0x18] sm:$0xf]
  %v35 = vld [vmem:[%s1 + $0x1c] sm:$0xf]
  %v36 = vld [vmem:[%s1 + $0x20] sm:$0xf]
  %v37 = vld [vmem:[%s1 + $0x24] sm:$0xf]
  %v38 = vld [vmem:[%s1 + $0x28] sm:$0xf]
  %v39 = vld [vmem:[%s1 + $0x2c] sm:$0xf]
  %v40 = vld [vmem:[%s1 + $0x30] sm:$0xf]
  %v41 = vld [vmem:[%s1 + $0x34] sm:$0xf]
  %v42 = vld [vmem:[%s1 + $0x38] sm:$0xf]
  %v43 = vld [vmem:[%s1 + $0x3c] sm:$0xf]
  %v44 = vld [vmem:[%s0] sm:$0xff]
  %v45 = vld [vmem:[%s0 + $0x8] sm:$0xff]
  %v46 = vld [vmem:[%s0 + $0x10] sm:$0xff]
  %v47 = vld [vmem:[%s0 + $0x18] sm:$0xff]
  %v48 = vld [vmem:[%s0 + $0x20] sm:$0xff]
  %v49 = vld [vmem:[%s0 + $0x28] sm:$0xff]
  %v50 = vld [vmem:[%s0 + $0x30] sm:$0xff]
  %v51 = vld [vmem:[%s0 + $0x38] sm:$0xff]
  %v52 = vld [vmem:[%s0 + $0x40] sm:$0xff]
  %v53 = vld [vmem:[%s0 + $0x48] sm:$0xff]
  %v54 = vld [vmem:[%s0 + $0x50] sm:$0xff]
  %v55 = vld [vmem:[%s0 + $0x58] sm:$0xff]
  %v56 = vld [vmem:[%s0 + $0x60] sm:$0xff]
  %v57 = vld [vmem:[%s0 + $0x68] sm:$0xff]
  %v58 = vld [vmem:[%s0 + $0x70] sm:$0xff]
  %v59 = vld [vmem:[%s0 + $0x78] sm:$0xff]
  %v60 = vpack.c.bf16 %v45, %v44
  %v61 = vpack.c.bf16 %v47, %v46
  %v62 = vpack.c.bf16 %v49, %v48
  %v63 = vpack.c.bf16 %v51, %v50
  %v64 = vpack.c.bf16 %v53, %v52
  %v65 = vpack.c.bf16 %v55, %v54
  %v66 = vpack.c.bf16 %v57, %v56
  %v67 = vpack.c.bf16 %v59, %v58
  %v68 = vld [vmem:[%s3] sm:$0xf]
  %v69 = vld [vmem:[%s3 + $0x4] sm:$0xf]
  %v70 = vlaneseq
  %v71 = vshrl.u32 %v70, 7
  %v72 = vsub.s32 0, %v71
  %v73 = vrot.slane %v27, %v72
  %v76 = vunpack.c.l.b16 %v68
  %v77 = vunpack.c.l.b16 %v69
  %v78 = vpack.c.b16 %v77, %v76
  %vm80 = vcmask 130048
  %v82 = vsel %vm80, %v60, 0
  %v85 = vsel %vm80, %v61, 0
  %v88 = vsel %vm80, %v62, 0
  %v91 = vsel %vm80, %v63, 0
  %v94 = vsel %vm80, %v64, 0
  %v97 = vsel %vm80, %v65, 0
  %v100 = vsel %vm80, %v66, 0
  %v103 = vsel %vm80, %v67, 0
  %105 = vmatprep.subr.bf16.mxu0 0
  %106 = vmatpush1.bf16.msra.mxu0 %v78
  %107 = vmatprep.subr.bf16.mxu0 0
  %108 = vmatpush1.bf16.msra.mxu0 0
  %109 = vmatprep.subr.bf16.mxu0 0
  %110 = vmatpush1.bf16.msra.mxu0 0
  %111 = vmatprep.subr.bf16.mxu0 0
  %112 = vmatpush1.bf16.msra.mxu0 0
  %113 = vmatprep.subr.bf16.mxu0 0
  %114 = vmatpush1.bf16.msra.mxu0 0
  %115 = vmatprep.subr.bf16.mxu0 0
  %116 = vmatpush1.bf16.msra.mxu0 0
  %117 = vmatprep.subr.bf16.mxu0 0
  %118 = vmatpush1.bf16.msra.mxu0 0
  %119 = vmatprep.subr.bf16.mxu0 0
  %120 = vmatpush1.bf16.msra.mxu0 0
  %121 = vmatprep.subr.bf16.mxu0 0
  %122 = vmatpush1.bf16.msra.mxu0 0
  %123 = vmatprep.subr.bf16.mxu0 0
  %124 = vmatpush1.bf16.msra.mxu0 0
  %125 = vmatprep.subr.bf16.mxu0 0
  %126 = vmatpush1.bf16.msra.mxu0 0
  %127 = vmatprep.subr.bf16.mxu0 0
  %128 = vmatpush1.bf16.msra.mxu0 0
  %129 = vmatprep.subr.bf16.mxu0 0
  %130 = vmatpush1.bf16.msra.mxu0 0
  %131 = vmatprep.subr.bf16.mxu0 0
  %132 = vmatpush1.bf16.msra.mxu0 0
  %133 = vmatprep.subr.bf16.mxu0 0
  %134 = vmatpush1.bf16.msra.mxu0 0
  %135 = vmatprep.subr.bf16.mxu0 0
  %136 = vmatpush1.bf16.msra.mxu0 0
  %137 = vmatprep.mubr.bf16.mxu0 0
  %138 = vmatmul.mubr.bf16.gmra.mrb[0].mxu0 %v82
  %v139 = vpop.f32.mrb[0].mxu0
  %v140 = vadd.f32 %v73, %v139
  %v141 = vpop.f32.mrb[0].mxu0
  %v142 = vpop.f32.mrb[0].mxu0
  %v143 = vadd.f32 %v73, %v142
  %v144 = vpop.f32.mrb[0].mxu0
  %145 = vmatprep.mubr.bf16.mxu0 0
  %146 = vmatmul.mubr.bf16.gmra.mrb[0].mxu0 %v85
  %v147 = vpop.f32.mrb[0].mxu0
  %v148 = vadd.f32 %v73, %v147
  %v149 = vpop.f32.mrb[0].mxu0
  %v150 = vpop.f32.mrb[0].mxu0
  %v151 = vadd.f32 %v73, %v150
  %v152 = vpop.f32.mrb[0].mxu0
  %153 = vmatprep.mubr.bf16.mxu0 0
  %154 = vmatmul.mubr.bf16.gmra.mrb[0].mxu0 %v88
  %v155 = vpop.f32.mrb[0].mxu0
  %v156 = vadd.f32 %v73, %v155
  %v157 = vpop.f32.mrb[0].mxu0
  %v158 = vpop.f32.mrb[0].mxu0
  %v159 = vadd.f32 %v73, %v158
  %v160 = vpop.f32.mrb[0].mxu0
  %161 = vmatprep.mubr.bf16.mxu0 0
  %162 = vmatmul.mubr.bf16.gmra.mrb[0].mxu0 %v91
  %v163 = vpop.f32.mrb[0].mxu0
  %v164 = vadd.f32 %v73, %v163
  %v165 = vpop.f32.mrb[0].mxu0
  %v166 = vpop.f32.mrb[0].mxu0
  %v167 = vadd.f32 %v73, %v166
  %v168 = vpop.f32.mrb[0].mxu0
  %169 = vmatprep.mubr.bf16.mxu0 0
  %170 = vmatmul.mubr.bf16.gmra.mrb[0].mxu0 %v94
  %v171 = vpop.f32.mrb[0].mxu0
  %v172 = vadd.f32 %v73, %v171
  %v173 = vpop.f32.mrb[0].mxu0
  %v174 = vpop.f32.mrb[0].mxu0
  %v175 = vadd.f32 %v73, %v174
  %v176 = vpop.f32.mrb[0].mxu0
  %177 = vmatprep.mubr.bf16.mxu0 0
  %178 = vmatmul.mubr.bf16.gmra.mrb[0].mxu0 %v97
  %v179 = vpop.f32.mrb[0].mxu0
  %v180 = vadd.f32 %v73, %v179
  %v181 = vpop.f32.mrb[0].mxu0
  %v182 = vpop.f32.mrb[0].mxu0
  %v183 = vadd.f32 %v73, %v182
  %v184 = vpop.f32.mrb[0].mxu0
  %185 = vmatprep.mubr.bf16.mxu0 0
  %186 = vmatmul.mubr.bf16.gmra.mrb[0].mxu0 %v100
  %v187 = vpop.f32.mrb[0].mxu0
  %v188 = vadd.f32 %v73, %v187
  %v189 = vpop.f32.mrb[0].mxu0
  %v190 = vpop.f32.mrb[0].mxu0
  %v191 = vadd.f32 %v73, %v190
  %v192 = vpop.f32.mrb[0].mxu0
  %193 = vmatprep.mubr.bf16.mxu0 0
  %194 = vmatmul.mubr.bf16.gmra.mrb[0].mxu0 %v103
  %v195 = vpop.f32.mrb[0].mxu0
  %v196 = vadd.f32 %v73, %v195
  %v197 = vpop.f32.mrb[0].mxu0
  %v198 = vpop.f32.mrb[0].mxu0
  %v199 = vadd.f32 %v73, %v198
  %v200 = vpop.f32.mrb[0].mxu0
  %201 = vdwg.mxu0
  %v202 = vmax.f32 %v140, 0.0
  %v203 = vmax.f32 %v143, 0.0
  %v204 = vmax.f32 %v148, 0.0
  %v205 = vmax.f32 %v151, 0.0
  %v206 = vmax.f32 %v156, 0.0
  %v207 = vmax.f32 %v159, 0.0
  %v208 = vmax.f32 %v164, 0.0
  %v209 = vmax.f32 %v167, 0.0
  %v210 = vmax.f32 %v172, 0.0
  %v211 = vmax.f32 %v175, 0.0
  %v212 = vmax.f32 %v180, 0.0
  %v213 = vmax.f32 %v183, 0.0
  %v214 = vmax.f32 %v188, 0.0
  %v215 = vmax.f32 %v191, 0.0
  %v216 = vmax.f32 %v196, 0.0
  %v217 = vmax.f32 %v199, 0.0
  %v218 = vpack.c.bf16 %v203, %v202
  %v219 = vpack.c.bf16 %v205, %v204
  %v220 = vpack.c.bf16 %v207, %v206
  %v221 = vpack.c.bf16 %v209, %v208
  %v222 = vpack.c.bf16 %v211, %v210
  %v223 = vpack.c.bf16 %v213, %v212
  %v224 = vpack.c.bf16 %v215, %v214
  %v225 = vpack.c.bf16 %v217, %v216
  %v242 = vunpack.c.l.b16 %v28
  %v243 = vunpack.c.l.b16 %v29
  %v244 = vunpack.c.l.b16 %v30
  %v245 = vunpack.c.l.b16 %v31
  %v246 = vunpack.c.l.b16 %v32
  %v247 = vunpack.c.l.b16 %v33
  %v248 = vunpack.c.l.b16 %v34
  %v249 = vunpack.c.l.b16 %v35
  %v250 = vunpack.c.l.b16 %v36
  %v251 = vunpack.c.l.b16 %v37
  %v252 = vunpack.c.l.b16 %v38
  %v253 = vunpack.c.l.b16 %v39
  %v254 = vunpack.c.l.b16 %v40
  %v255 = vunpack.c.l.b16 %v41
  %v256 = vunpack.c.l.b16 %v42
  %v257 = vunpack.c.l.b16 %v43
  %v258 = vpack.c.b16 %v243, %v242
  %v259 = vpack.c.b16 %v245, %v244
  %v260 = vpack.c.b16 %v247, %v246
  %v261 = vpack.c.b16 %v249, %v248
  %v262 = vpack.c.b16 %v251, %v250
  %v263 = vpack.c.b16 %v253, %v252
  %v264 = vpack.c.b16 %v255, %v254
  %v265 = vpack.c.b16 %v257, %v256
  %274 = vmatprep.subr.bf16.mxu0 0
  %275 = vmatpush1.bf16.msra.mxu0 %v218
  %276 = vmatprep.subr.bf16.mxu0 0
  %277 = vmatpush1.bf16.msra.mxu0 %v219
  %278 = vmatprep.subr.bf16.mxu0 0
  %279 = vmatpush1.bf16.msra.mxu0 %v220
  %280 = vmatprep.subr.bf16.mxu0 0
  %281 = vmatpush1.bf16.msra.mxu0 %v221
  %282 = vmatprep.subr.bf16.mxu0 0
  %283 = vmatpush1.bf16.msra.mxu0 %v222
  %284 = vmatprep.subr.bf16.mxu0 0
  %285 = vmatpush1.bf16.msra.mxu0 %v223
  %286 = vmatprep.subr.bf16.mxu0 0
  %287 = vmatpush1.bf16.msra.mxu0 %v224
  %288 = vmatprep.subr.bf16.mxu0 0
  %289 = vmatpush1.bf16.msra.mxu0 %v225
  %290 = vmatprep.subr.bf16.mxu0 0
  %291 = vmatpush1.bf16.msra.mxu0 0
  %292 = vmatprep.subr.bf16.mxu0 0
  %293 = vmatpush1.bf16.msra.mxu0 0
  %294 = vmatprep.subr.bf16.mxu0 0
  %295 = vmatpush1.bf16.msra.mxu0 0
  %296 = vmatprep.subr.bf16.mxu0 0
  %297 = vmatpush1.bf16.msra.mxu0 0
  %298 = vmatprep.subr.bf16.mxu0 0
  %299 = vmatpush1.bf16.msra.mxu0 0
  %300 = vmatprep.subr.bf16.mxu0 0
  %301 = vmatpush1.bf16.msra.mxu0 0
  %302 = vmatprep.subr.bf16.mxu0 0
  %303 = vmatpush1.bf16.msra.mxu0 0
  %304 = vmatprep.subr.bf16.mxu0 0
  %305 = vmatpush1.bf16.msra.mxu0 0
  %306 = vmatprep.mubr.bf16.mxu0 0
  %307 = vmatmul.mubr.bf16.gmra.mrb[0].mxu0 %v258
  %v308 = vpop.f32.mrb[0].mxu0
  %v309 = vadd.f32 0.0, %v308
  %v310 = vpop.f32.mrb[0].mxu0
  %v311 = vpop.f32.mrb[0].mxu0
  %v312 = vadd.f32 0.0, %v311
  %v313 = vpop.f32.mrb[0].mxu0
  %314 = vmatprep.mubr.bf16.mxu0 0
  %315 = vmatmul.mubr.bf16.gmra.mrb[0].mxu0 %v259
  %v316 = vpop.f32.mrb[0].mxu0
  %v317 = vadd.f32 0.0, %v316
  %v318 = vpop.f32.mrb[0].mxu0
  %v319 = vpop.f32.mrb[0].mxu0
  %v320 = vadd.f32 0.0, %v319
  %v321 = vpop.f32.mrb[0].mxu0
  %322 = vmatprep.mubr.bf16.mxu0 0
  %323 = vmatmul.mubr.bf16.gmra.mrb[0].mxu0 %v260
  %v324 = vpop.f32.mrb[0].mxu0
  %v325 = vadd.f32 0.0, %v324
  %v326 = vpop.f32.mrb[0].mxu0
  %v327 = vpop.f32.mrb[0].mxu0
  %v328 = vadd.f32 0.0, %v327
  %v329 = vpop.f32.mrb[0].mxu0
  %330 = vmatprep.mubr.bf16.mxu0 0
  %331 = vmatmul.mubr.bf16.gmra.mrb[0].mxu0 %v261
  %v332 = vpop.f32.mrb[0].mxu0
  %v333 = vadd.f32 0.0, %v332
  %v334 = vpop.f32.mrb[0].mxu0
  %v335 = vpop.f32.mrb[0].mxu0
  %v336 = vadd.f32 0.0, %v335
  %v337 = vpop.f32.mrb[0].mxu0
  %338 = vmatprep.mubr.bf16.mxu0 0
  %339 = vmatmul.mubr.bf16.gmra.mrb[0].mxu0 %v262
  %v340 = vpop.f32.mrb[0].mxu0
  %v341 = vadd.f32 0.0, %v340
  %v342 = vpop.f32.mrb[0].mxu0
  %v343 = vpop.f32.mrb[0].mxu0
  %v344 = vadd.f32 0.0, %v343
  %v345 = vpop.f32.mrb[0].mxu0
  %346 = vmatprep.mubr.bf16.mxu0 0
  %347 = vmatmul.mubr.bf16.gmra.mrb[0].mxu0 %v263
  %v348 = vpop.f32.mrb[0].mxu0
  %v349 = vadd.f32 0.0, %v348
  %v350 = vpop.f32.mrb[0].mxu0
  %v351 = vpop.f32.mrb[0].mxu0
  %v352 = vadd.f32 0.0, %v351
  %v353 = vpop.f32.mrb[0].mxu0
  %354 = vmatprep.mubr.bf16.mxu0 0
  %355 = vmatmul.mubr.bf16.gmra.mrb[0].mxu0 %v264
  %v356 = vpop.f32.mrb[0].mxu0
  %v357 = vadd.f32 0.0, %v356
  %v358 = vpop.f32.mrb[0].mxu0
  %v359 = vpop.f32.mrb[0].mxu0
  %v360 = vadd.f32 0.0, %v359
  %v361 = vpop.f32.mrb[0].mxu0
  %362 = vmatprep.mubr.bf16.mxu0 0
  %363 = vmatmul.mubr.bf16.gmra.mrb[0].mxu0 %v265
  %v364 = vpop.f32.mrb[0].mxu0
  %v365 = vadd.f32 0.0, %v364
  %v366 = vpop.f32.mrb[0].mxu0
  %v367 = vpop.f32.mrb[0].mxu0
  %v368 = vadd.f32 0.0, %v367
  %v369 = vpop.f32.mrb[0].mxu0
  %370 = vdwg.mxu0
  %371 = vadd.xlane.f32.xlu0 %v309
  %v372 = vpop.xlane.xlu0 %371
  %373 = vadd.xlane.f32.xlu0 %v312
  %v374 = vpop.xlane.xlu0 %373
  %375 = vadd.xlane.f32.xlu0 %v317
  %v376 = vpop.xlane.xlu0 %375
  %377 = vadd.xlane.f32.xlu0 %v320
  %v378 = vpop.xlane.xlu0 %377
  %379 = vadd.xlane.f32.xlu0 %v325
  %v380 = vpop.xlane.xlu0 %379
  %381 = vadd.xlane.f32.xlu0 %v328
  %v382 = vpop.xlane.xlu0 %381
  %383 = vadd.xlane.f32.xlu0 %v333
  %v384 = vpop.xlane.xlu0 %383
  %385 = vadd.xlane.f32.xlu0 %v336
  %v386 = vpop.xlane.xlu0 %385
  %387 = vadd.xlane.f32.xlu0 %v341
  %v388 = vpop.xlane.xlu0 %387
  %389 = vadd.xlane.f32.xlu0 %v344
  %v390 = vpop.xlane.xlu0 %389
  %391 = vadd.xlane.f32.xlu0 %v349
  %v392 = vpop.xlane.xlu0 %391
  %393 = vadd.xlane.f32.xlu0 %v352
  %v394 = vpop.xlane.xlu0 %393
  %395 = vadd.xlane.f32.xlu0 %v357
  %v396 = vpop.xlane.xlu0 %395
  %397 = vadd.xlane.f32.xlu0 %v360
  %v398 = vpop.xlane.xlu0 %397
  %399 = vadd.xlane.f32.xlu0 %v365
  %v400 = vpop.xlane.xlu0 %399
  %401 = vadd.xlane.f32.xlu0 %v368
  %v402 = vpop.xlane.xlu0 %401
  %v403 = vrcp.pop 128.0
  %v404 = vmul.f32 %v372, %v403
  %v405 = vmul.f32 %v374, %v403
  %v406 = vmul.f32 %v376, %v403
  %v407 = vmul.f32 %v378, %v403
  %v408 = vmul.f32 %v380, %v403
  %v409 = vmul.f32 %v382, %v403
  %v410 = vmul.f32 %v384, %v403
  %v411 = vmul.f32 %v386, %v403
  %v412 = vmul.f32 %v388, %v403
  %v413 = vmul.f32 %v390, %v403
  %v414 = vmul.f32 %v392, %v403
  %v415 = vmul.f32 %v394, %v403
  %v416 = vmul.f32 %v396, %v403
  %v417 = vmul.f32 %v398, %v403
  %v418 = vmul.f32 %v400, %v403
  %v419 = vmul.f32 %v402, %v403
  %v420 = vsub.f32 %v309, %v404
  %v421 = vsub.f32 %v312, %v405
  %v422 = vsub.f32 %v317, %v406
  %v423 = vsub.f32 %v320, %v407
  %v424 = vsub.f32 %v325, %v408
  %v425 = vsub.f32 %v328, %v409
  %v426 = vsub.f32 %v333, %v410
  %v427 = vsub.f32 %v336, %v411
  %v428 = vsub.f32 %v341, %v412
  %v429 = vsub.f32 %v344, %v413
  %v430 = vsub.f32 %v349, %v414
  %v431 = vsub.f32 %v352, %v415
  %v432 = vsub.f32 %v357, %v416
  %v433 = vsub.f32 %v360, %v417
  %v434 = vsub.f32 %v365, %v418
  %v435 = vsub.f32 %v368, %v419
  %v436 = vmul.f32 %v420, %v420
  %v437 = vmul.f32 %v421, %v421
  %v438 = vmul.f32 %v422, %v422
  %v439 = vmul.f32 %v423, %v423
  %v440 = vmul.f32 %v424, %v424
  %v441 = vmul.f32 %v425, %v425
  %v442 = vmul.f32 %v426, %v426
  %v443 = vmul.f32 %v427, %v427
  %v444 = vmul.f32 %v428, %v428
  %v445 = vmul.f32 %v429, %v429
  %v446 = vmul.f32 %v430, %v430
  %v447 = vmul.f32 %v431, %v431
  %v448 = vmul.f32 %v432, %v432
  %v449 = vmul.f32 %v433, %v433
  %v450 = vmul.f32 %v434, %v434
  %v451 = vmul.f32 %v435, %v435
  %452 = vadd.xlane.f32.xlu0 %v436
  %v453 = vpop.xlane.xlu0 %452
  %454 = vadd.xlane.f32.xlu0 %v437
  %v455 = vpop.xlane.xlu0 %454
  %456 = vadd.xlane.f32.xlu0 %v438
  %v457 = vpop.xlane.xlu0 %456
  %458 = vadd.xlane.f32.xlu0 %v439
  %v459 = vpop.xlane.xlu0 %458
  %460 = vadd.xlane.f32.xlu0 %v440
  %v461 = vpop.xlane.xlu0 %460
  %462 = vadd.xlane.f32.xlu0 %v441
  %v463 = vpop.xlane.xlu0 %462
  %464 = vadd.xlane.f32.xlu0 %v442
  %v465 = vpop.xlane.xlu0 %464
  %466 = vadd.xlane.f32.xlu0 %v443
  %v467 = vpop.xlane.xlu0 %466
  %468 = vadd.xlane.f32.xlu0 %v444
  %v469 = vpop.xlane.xlu0 %468
  %470 = vadd.xlane.f32.xlu0 %v445
  %v471 = vpop.xlane.xlu0 %470
  %472 = vadd.xlane.f32.xlu0 %v446
  %v473 = vpop.xlane.xlu0 %472
  %474 = vadd.xlane.f32.xlu0 %v447
  %v475 = vpop.xlane.xlu0 %474
  %476 = vadd.xlane.f32.xlu0 %v448
  %v477 = vpop.xlane.xlu0 %476
  %478 = vadd.xlane.f32.xlu0 %v449
  %v479 = vpop.xlane.xlu0 %478
  %480 = vadd.xlane.f32.xlu0 %v450
  %v481 = vpop.xlane.xlu0 %480
  %482 = vadd.xlane.f32.xlu0 %v451
  %v483 = vpop.xlane.xlu0 %482
  %v484 = vmul.f32 %v453, %v403
  %v485 = vmul.f32 %v455, %v403
  %v486 = vmul.f32 %v457, %v403
  %v487 = vmul.f32 %v459, %v403
  %v488 = vmul.f32 %v461, %v403
  %v489 = vmul.f32 %v463, %v403
  %v490 = vmul.f32 %v465, %v403
  %v491 = vmul.f32 %v467, %v403
  %v492 = vmul.f32 %v469, %v403
  %v493 = vmul.f32 %v471, %v403
  %v494 = vmul.f32 %v473, %v403
  %v495 = vmul.f32 %v475, %v403
  %v496 = vmul.f32 %v477, %v403
  %v497 = vmul.f32 %v479, %v403
  %v498 = vmul.f32 %v481, %v403
  %v499 = vmul.f32 %v483, %v403
  %v500 = vadd.f32 %v484, 1e-05
  %v501 = vadd.f32 %v485, 1e-05
  %v502 = vadd.f32 %v486, 1e-05
  %v503 = vadd.f32 %v487, 1e-05
  %v504 = vadd.f32 %v488, 1e-05
  %v505 = vadd.f32 %v489, 1e-05
  %v506 = vadd.f32 %v490, 1e-05
  %v507 = vadd.f32 %v491, 1e-05
  %v508 = vadd.f32 %v492, 1e-05
  %v509 = vadd.f32 %v493, 1e-05
  %v510 = vadd.f32 %v494, 1e-05
  %v511 = vadd.f32 %v495, 1e-05
  %v512 = vadd.f32 %v496, 1e-05
  %v513 = vadd.f32 %v497, 1e-05
  %v514 = vadd.f32 %v498, 1e-05
  %v515 = vadd.f32 %v499, 1e-05
  %v516 = vrsqrt.pop %v500
  %v517 = vrsqrt.pop %v501
  %v518 = vrsqrt.pop %v502
  %v519 = vrsqrt.pop %v503
  %v520 = vrsqrt.pop %v504
  %v521 = vrsqrt.pop %v505
  %v522 = vrsqrt.pop %v506
  %v523 = vrsqrt.pop %v507
  %v524 = vrsqrt.pop %v508
  %v525 = vrsqrt.pop %v509
  %v526 = vrsqrt.pop %v510
  %v527 = vrsqrt.pop %v511
  %v528 = vrsqrt.pop %v512
  %v529 = vrsqrt.pop %v513
  %v530 = vrsqrt.pop %v514
  %v531 = vrsqrt.pop %v515
  %v532 = vmul.f32 %v420, %v516
  %v533 = vmul.f32 %v421, %v517
  %v534 = vmul.f32 %v422, %v518
  %v535 = vmul.f32 %v423, %v519
  %v536 = vmul.f32 %v424, %v520
  %v537 = vmul.f32 %v425, %v521
  %v538 = vmul.f32 %v426, %v522
  %v539 = vmul.f32 %v427, %v523
  %v540 = vmul.f32 %v428, %v524
  %v541 = vmul.f32 %v429, %v525
  %v542 = vmul.f32 %v430, %v526
  %v543 = vmul.f32 %v431, %v527
  %v544 = vmul.f32 %v432, %v528
  %v545 = vmul.f32 %v433, %v529
  %v546 = vmul.f32 %v434, %v530
  %v547 = vmul.f32 %v435, %v531
  %v548 = vpack.c.bf16 %v533, %v532
  %v549 = vpack.c.bf16 %v535, %v534
  %v550 = vpack.c.bf16 %v537, %v536
  %v551 = vpack.c.bf16 %v539, %v538
  %v552 = vpack.c.bf16 %v541, %v540
  %v553 = vpack.c.bf16 %v543, %v542
  %v554 = vpack.c.bf16 %v545, %v544
  %v555 = vpack.c.bf16 %v547, %v546
  %v556 = vld [vmem:[%s4] sm:$0xf]
  %v557 = vld [vmem:[%s4 + $0x4] sm:$0xf]
  %v558 = vld [vmem:[%s4 + $0x8] sm:$0xf]
  %v559 = vld [vmem:[%s4 + $0xc] sm:$0xf]
  %v560 = vld [vmem:[%s4 + $0x10] sm:$0xf]
  %v561 = vld [vmem:[%s4 + $0x14] sm:$0xf]
  %v562 = vld [vmem:[%s4 + $0x18] sm:$0xf]
  %v563 = vld [vmem:[%s4 + $0x1c] sm:$0xf]
  %v564 = vld [vmem:[%s4 + $0x20] sm:$0xf]
  %v565 = vld [vmem:[%s4 + $0x24] sm:$0xf]
  %v566 = vld [vmem:[%s4 + $0x28] sm:$0xf]
  %v567 = vld [vmem:[%s4 + $0x2c] sm:$0xf]
  %v568 = vld [vmem:[%s4 + $0x30] sm:$0xf]
  %v569 = vld [vmem:[%s4 + $0x34] sm:$0xf]
  %v570 = vld [vmem:[%s4 + $0x38] sm:$0xf]
  %v571 = vld [vmem:[%s4 + $0x3c] sm:$0xf]
  %v572 = vlaneseq
  %v573 = vshrl.u32 %v572, 7
  %v574 = vsub.s32 1, %v573
  %v575 = vrot.slane %v27, %v574
  %v592 = vunpack.c.l.b16 %v556
  %v593 = vunpack.c.l.b16 %v557
  %v594 = vunpack.c.l.b16 %v558
  %v595 = vunpack.c.l.b16 %v559
  %v596 = vunpack.c.l.b16 %v560
  %v597 = vunpack.c.l.b16 %v561
  %v598 = vunpack.c.l.b16 %v562
  %v599 = vunpack.c.l.b16 %v563
  %v600 = vunpack.c.l.b16 %v564
  %v601 = vunpack.c.l.b16 %v565
  %v602 = vunpack.c.l.b16 %v566
  %v603 = vunpack.c.l.b16 %v567
  %v604 = vunpack.c.l.b16 %v568
  %v605 = vunpack.c.l.b16 %v569
  %v606 = vunpack.c.l.b16 %v570
  %v607 = vunpack.c.l.b16 %v571
  %v608 = vpack.c.b16 %v593, %v592
  %v609 = vpack.c.b16 %v595, %v594
  %v610 = vpack.c.b16 %v597, %v596
  %v611 = vpack.c.b16 %v599, %v598
  %v612 = vpack.c.b16 %v601, %v600
  %v613 = vpack.c.b16 %v603, %v602
  %v614 = vpack.c.b16 %v605, %v604
  %v615 = vpack.c.b16 %v607, %v606
  %624 = vmatprep.subr.bf16.mxu0 0
  %625 = vmatpush1.bf16.msra.mxu0 %v608
  %626 = vmatprep.subr.bf16.mxu0 0
  %627 = vmatpush1.bf16.msra.mxu0 %v609
  %628 = vmatprep.subr.bf16.mxu0 0
  %629 = vmatpush1.bf16.msra.mxu0 %v610
  %630 = vmatprep.subr.bf16.mxu0 0
  %631 = vmatpush1.bf16.msra.mxu0 %v611
  %632 = vmatprep.subr.bf16.mxu0 0
  %633 = vmatpush1.bf16.msra.mxu0 %v612
  %634 = vmatprep.subr.bf16.mxu0 0
  %635 = vmatpush1.bf16.msra.mxu0 %v613
  %636 = vmatprep.subr.bf16.mxu0 0
  %637 = vmatpush1.bf16.msra.mxu0 %v614
  %638 = vmatprep.subr.bf16.mxu0 0
  %639 = vmatpush1.bf16.msra.mxu0 %v615
  %640 = vmatprep.subr.bf16.mxu0 0
  %641 = vmatpush1.bf16.msra.mxu0 0
  %642 = vmatprep.subr.bf16.mxu0 0
  %643 = vmatpush1.bf16.msra.mxu0 0
  %644 = vmatprep.subr.bf16.mxu0 0
  %645 = vmatpush1.bf16.msra.mxu0 0
  %646 = vmatprep.subr.bf16.mxu0 0
  %647 = vmatpush1.bf16.msra.mxu0 0
  %648 = vmatprep.subr.bf16.mxu0 0
  %649 = vmatpush1.bf16.msra.mxu0 0
  %650 = vmatprep.subr.bf16.mxu0 0
  %651 = vmatpush1.bf16.msra.mxu0 0
  %652 = vmatprep.subr.bf16.mxu0 0
  %653 = vmatpush1.bf16.msra.mxu0 0
  %654 = vmatprep.subr.bf16.mxu0 0
  %655 = vmatpush1.bf16.msra.mxu0 0
  %656 = vmatprep.mubr.bf16.mxu0 0
  %657 = vmatmul.mubr.bf16.gmra.mrb[0].mxu0 %v548
  %v658 = vpop.f32.mrb[0].mxu0
  %v659 = vadd.f32 %v575, %v658
  %v660 = vpop.f32.mrb[0].mxu0
  %v661 = vpop.f32.mrb[0].mxu0
  %v662 = vadd.f32 %v575, %v661
  %v663 = vpop.f32.mrb[0].mxu0
  %664 = vmatprep.mubr.bf16.mxu0 0
  %665 = vmatmul.mubr.bf16.gmra.mrb[0].mxu0 %v549
  %v666 = vpop.f32.mrb[0].mxu0
  %v667 = vadd.f32 %v575, %v666
  %v668 = vpop.f32.mrb[0].mxu0
  %v669 = vpop.f32.mrb[0].mxu0
  %v670 = vadd.f32 %v575, %v669
  %v671 = vpop.f32.mrb[0].mxu0
  %672 = vmatprep.mubr.bf16.mxu0 0
  %673 = vmatmul.mubr.bf16.gmra.mrb[0].mxu0 %v550
  %v674 = vpop.f32.mrb[0].mxu0
  %v675 = vadd.f32 %v575, %v674
  %v676 = vpop.f32.mrb[0].mxu0
  %v677 = vpop.f32.mrb[0].mxu0
  %v678 = vadd.f32 %v575, %v677
  %v679 = vpop.f32.mrb[0].mxu0
  %680 = vmatprep.mubr.bf16.mxu0 0
  %681 = vmatmul.mubr.bf16.gmra.mrb[0].mxu0 %v551
  %v682 = vpop.f32.mrb[0].mxu0
  %v683 = vadd.f32 %v575, %v682
  %v684 = vpop.f32.mrb[0].mxu0
  %v685 = vpop.f32.mrb[0].mxu0
  %v686 = vadd.f32 %v575, %v685
  %v687 = vpop.f32.mrb[0].mxu0
  %688 = vmatprep.mubr.bf16.mxu0 0
  %689 = vmatmul.mubr.bf16.gmra.mrb[0].mxu0 %v552
  %v690 = vpop.f32.mrb[0].mxu0
  %v691 = vadd.f32 %v575, %v690
  %v692 = vpop.f32.mrb[0].mxu0
  %v693 = vpop.f32.mrb[0].mxu0
  %v694 = vadd.f32 %v575, %v693
  %v695 = vpop.f32.mrb[0].mxu0
  %696 = vmatprep.mubr.bf16.mxu0 0
  %697 = vmatmul.mubr.bf16.gmra.mrb[0].mxu0 %v553
  %v698 = vpop.f32.mrb[0].mxu0
  %v699 = vadd.f32 %v575, %v698
  %v700 = vpop.f32.mrb[0].mxu0
  %v701 = vpop.f32.mrb[0].mxu0
  %v702 = vadd.f32 %v575, %v701
  %v703 = vpop.f32.mrb[0].mxu0
  %704 = vmatprep.mubr.bf16.mxu0 0
  %705 = vmatmul.mubr.bf16.gmra.mrb[0].mxu0 %v554
  %v706 = vpop.f32.mrb[0].mxu0
  %v707 = vadd.f32 %v575, %v706
  %v708 = vpop.f32.mrb[0].mxu0
  %v709 = vpop.f32.mrb[0].mxu0
  %v710 = vadd.f32 %v575, %v709
  %v711 = vpop.f32.mrb[0].mxu0
  %712 = vmatprep.mubr.bf16.mxu0 0
  %713 = vmatmul.mubr.bf16.gmra.mrb[0].mxu0 %v555
  %v714 = vpop.f32.mrb[0].mxu0
  %v715 = vadd.f32 %v575, %v714
  %v716 = vpop.f32.mrb[0].mxu0
  %v717 = vpop.f32.mrb[0].mxu0
  %v718 = vadd.f32 %v575, %v717
  %v719 = vpop.f32.mrb[0].mxu0
  %720 = vdwg.mxu0
  %v721 = vmax.f32 %v659, 0.0
  %v722 = vmax.f32 %v662, 0.0
  %v723 = vmax.f32 %v667, 0.0
  %v724 = vmax.f32 %v670, 0.0
  %v725 = vmax.f32 %v675, 0.0
  %v726 = vmax.f32 %v678, 0.0
  %v727 = vmax.f32 %v683, 0.0
  %v728 = vmax.f32 %v686, 0.0
  %v729 = vmax.f32 %v691, 0.0
  %v730 = vmax.f32 %v694, 0.0
  %v731 = vmax.f32 %v699, 0.0
  %v732 = vmax.f32 %v702, 0.0
  %v733 = vmax.f32 %v707, 0.0
  %v734 = vmax.f32 %v710, 0.0
  %v735 = vmax.f32 %v715, 0.0
  %v736 = vmax.f32 %v718, 0.0
  %v737 = vpack.c.bf16 %v722, %v721
  %v738 = vpack.c.bf16 %v724, %v723
  %v739 = vpack.c.bf16 %v726, %v725
  %v740 = vpack.c.bf16 %v728, %v727
  %v741 = vpack.c.bf16 %v730, %v729
  %v742 = vpack.c.bf16 %v732, %v731
  %v743 = vpack.c.bf16 %v734, %v733
  %v744 = vpack.c.bf16 %v736, %v735
  %745 = vmatprep.subr.bf16.mxu0 0
  %746 = vmatpush1.bf16.msra.mxu0 %v737
  %747 = vmatprep.subr.bf16.mxu0 0
  %748 = vmatpush1.bf16.msra.mxu0 %v738
  %749 = vmatprep.subr.bf16.mxu0 0
  %750 = vmatpush1.bf16.msra.mxu0 %v739
  %751 = vmatprep.subr.bf16.mxu0 0
  %752 = vmatpush1.bf16.msra.mxu0 %v740
  %753 = vmatprep.subr.bf16.mxu0 0
  %754 = vmatpush1.bf16.msra.mxu0 %v741
  %755 = vmatprep.subr.bf16.mxu0 0
  %756 = vmatpush1.bf16.msra.mxu0 %v742
  %757 = vmatprep.subr.bf16.mxu0 0
  %758 = vmatpush1.bf16.msra.mxu0 %v743
  %759 = vmatprep.subr.bf16.mxu0 0
  %760 = vmatpush1.bf16.msra.mxu0 %v744
  %761 = vmatprep.subr.bf16.mxu0 0
  %762 = vmatpush1.bf16.msra.mxu0 0
  %763 = vmatprep.subr.bf16.mxu0 0
  %764 = vmatpush1.bf16.msra.mxu0 0
  %765 = vmatprep.subr.bf16.mxu0 0
  %766 = vmatpush1.bf16.msra.mxu0 0
  %767 = vmatprep.subr.bf16.mxu0 0
  %768 = vmatpush1.bf16.msra.mxu0 0
  %769 = vmatprep.subr.bf16.mxu0 0
  %770 = vmatpush1.bf16.msra.mxu0 0
  %771 = vmatprep.subr.bf16.mxu0 0
  %772 = vmatpush1.bf16.msra.mxu0 0
  %773 = vmatprep.subr.bf16.mxu0 0
  %774 = vmatpush1.bf16.msra.mxu0 0
  %775 = vmatprep.subr.bf16.mxu0 0
  %776 = vmatpush1.bf16.msra.mxu0 0
  %777 = vmatprep.mubr.bf16.mxu0 0
  %778 = vmatmul.mubr.bf16.gmra.mrb[0].mxu0 %v258
  %v779 = vpop.f32.mrb[0].mxu0
  %v780 = vadd.f32 0.0, %v779
  %v781 = vpop.f32.mrb[0].mxu0
  %v782 = vpop.f32.mrb[0].mxu0
  %v783 = vadd.f32 0.0, %v782
  %v784 = vpop.f32.mrb[0].mxu0
  %785 = vmatprep.mubr.bf16.mxu0 0
  %786 = vmatmul.mubr.bf16.gmra.mrb[0].mxu0 %v259
  %v787 = vpop.f32.mrb[0].mxu0
  %v788 = vadd.f32 0.0, %v787
  %v789 = vpop.f32.mrb[0].mxu0
  %v790 = vpop.f32.mrb[0].mxu0
  %v791 = vadd.f32 0.0, %v790
  %v792 = vpop.f32.mrb[0].mxu0
  %793 = vmatprep.mubr.bf16.mxu0 0
  %794 = vmatmul.mubr.bf16.gmra.mrb[0].mxu0 %v260
  %v795 = vpop.f32.mrb[0].mxu0
  %v796 = vadd.f32 0.0, %v795
  %v797 = vpop.f32.mrb[0].mxu0
  %v798 = vpop.f32.mrb[0].mxu0
  %v799 = vadd.f32 0.0, %v798
  %v800 = vpop.f32.mrb[0].mxu0
  %801 = vmatprep.mubr.bf16.mxu0 0
  %802 = vmatmul.mubr.bf16.gmra.mrb[0].mxu0 %v261
  %v803 = vpop.f32.mrb[0].mxu0
  %v804 = vadd.f32 0.0, %v803
  %v805 = vpop.f32.mrb[0].mxu0
  %v806 = vpop.f32.mrb[0].mxu0
  %v807 = vadd.f32 0.0, %v806
  %v808 = vpop.f32.mrb[0].mxu0
  %809 = vmatprep.mubr.bf16.mxu0 0
  %810 = vmatmul.mubr.bf16.gmra.mrb[0].mxu0 %v262
  %v811 = vpop.f32.mrb[0].mxu0
  %v812 = vadd.f32 0.0, %v811
  %v813 = vpop.f32.mrb[0].mxu0
  %v814 = vpop.f32.mrb[0].mxu0
  %v815 = vadd.f32 0.0, %v814
  %v816 = vpop.f32.mrb[0].mxu0
  %817 = vmatprep.mubr.bf16.mxu0 0
  %818 = vmatmul.mubr.bf16.gmra.mrb[0].mxu0 %v263
  %v819 = vpop.f32.mrb[0].mxu0
  %v820 = vadd.f32 0.0, %v819
  %v821 = vpop.f32.mrb[0].mxu0
  %v822 = vpop.f32.mrb[0].mxu0
  %v823 = vadd.f32 0.0, %v822
  %v824 = vpop.f32.mrb[0].mxu0
  %825 = vmatprep.mubr.bf16.mxu0 0
  %826 = vmatmul.mubr.bf16.gmra.mrb[0].mxu0 %v264
  %v827 = vpop.f32.mrb[0].mxu0
  %v828 = vadd.f32 0.0, %v827
  %v829 = vpop.f32.mrb[0].mxu0
  %v830 = vpop.f32.mrb[0].mxu0
  %v831 = vadd.f32 0.0, %v830
  %v832 = vpop.f32.mrb[0].mxu0
  %833 = vmatprep.mubr.bf16.mxu0 0
  %834 = vmatmul.mubr.bf16.gmra.mrb[0].mxu0 %v265
  %v835 = vpop.f32.mrb[0].mxu0
  %v836 = vadd.f32 0.0, %v835
  %v837 = vpop.f32.mrb[0].mxu0
  %v838 = vpop.f32.mrb[0].mxu0
  %v839 = vadd.f32 0.0, %v838
  %v840 = vpop.f32.mrb[0].mxu0
  %841 = vdwg.mxu0
  %842 = vadd.xlane.f32.xlu0 %v780
  %v843 = vpop.xlane.xlu0 %842
  %844 = vadd.xlane.f32.xlu0 %v783
  %v845 = vpop.xlane.xlu0 %844
  %846 = vadd.xlane.f32.xlu0 %v788
  %v847 = vpop.xlane.xlu0 %846
  %848 = vadd.xlane.f32.xlu0 %v791
  %v849 = vpop.xlane.xlu0 %848
  %850 = vadd.xlane.f32.xlu0 %v796
  %v851 = vpop.xlane.xlu0 %850
  %852 = vadd.xlane.f32.xlu0 %v799
  %v853 = vpop.xlane.xlu0 %852
  %854 = vadd.xlane.f32.xlu0 %v804
  %v855 = vpop.xlane.xlu0 %854
  %856 = vadd.xlane.f32.xlu0 %v807
  %v857 = vpop.xlane.xlu0 %856
  %858 = vadd.xlane.f32.xlu0 %v812
  %v859 = vpop.xlane.xlu0 %858
  %860 = vadd.xlane.f32.xlu0 %v815
  %v861 = vpop.xlane.xlu0 %860
  %862 = vadd.xlane.f32.xlu0 %v820
  %v863 = vpop.xlane.xlu0 %862
  %864 = vadd.xlane.f32.xlu0 %v823
  %v865 = vpop.xlane.xlu0 %864
  %866 = vadd.xlane.f32.xlu0 %v828
  %v867 = vpop.xlane.xlu0 %866
  %868 = vadd.xlane.f32.xlu0 %v831
  %v869 = vpop.xlane.xlu0 %868
  %870 = vadd.xlane.f32.xlu0 %v836
  %v871 = vpop.xlane.xlu0 %870
  %872 = vadd.xlane.f32.xlu0 %v839
  %v873 = vpop.xlane.xlu0 %872
  %v874 = vmul.f32 %v843, %v403
  %v875 = vmul.f32 %v845, %v403
  %v876 = vmul.f32 %v847, %v403
  %v877 = vmul.f32 %v849, %v403
  %v878 = vmul.f32 %v851, %v403
  %v879 = vmul.f32 %v853, %v403
  %v880 = vmul.f32 %v855, %v403
  %v881 = vmul.f32 %v857, %v403
  %v882 = vmul.f32 %v859, %v403
  %v883 = vmul.f32 %v861, %v403
  %v884 = vmul.f32 %v863, %v403
  %v885 = vmul.f32 %v865, %v403
  %v886 = vmul.f32 %v867, %v403
  %v887 = vmul.f32 %v869, %v403
  %v888 = vmul.f32 %v871, %v403
  %v889 = vmul.f32 %v873, %v403
  %v890 = vsub.f32 %v780, %v874
  %v891 = vsub.f32 %v783, %v875
  %v892 = vsub.f32 %v788, %v876
  %v893 = vsub.f32 %v791, %v877
  %v894 = vsub.f32 %v796, %v878
  %v895 = vsub.f32 %v799, %v879
  %v896 = vsub.f32 %v804, %v880
  %v897 = vsub.f32 %v807, %v881
  %v898 = vsub.f32 %v812, %v882
  %v899 = vsub.f32 %v815, %v883
  %v900 = vsub.f32 %v820, %v884
  %v901 = vsub.f32 %v823, %v885
  %v902 = vsub.f32 %v828, %v886
  %v903 = vsub.f32 %v831, %v887
  %v904 = vsub.f32 %v836, %v888
  %v905 = vsub.f32 %v839, %v889
  %v906 = vmul.f32 %v890, %v890
  %v907 = vmul.f32 %v891, %v891
  %v908 = vmul.f32 %v892, %v892
  %v909 = vmul.f32 %v893, %v893
  %v910 = vmul.f32 %v894, %v894
  %v911 = vmul.f32 %v895, %v895
  %v912 = vmul.f32 %v896, %v896
  %v913 = vmul.f32 %v897, %v897
  %v914 = vmul.f32 %v898, %v898
  %v915 = vmul.f32 %v899, %v899
  %v916 = vmul.f32 %v900, %v900
  %v917 = vmul.f32 %v901, %v901
  %v918 = vmul.f32 %v902, %v902
  %v919 = vmul.f32 %v903, %v903
  %v920 = vmul.f32 %v904, %v904
  %v921 = vmul.f32 %v905, %v905
  %922 = vadd.xlane.f32.xlu0 %v906
  %v923 = vpop.xlane.xlu0 %922
  %924 = vadd.xlane.f32.xlu0 %v907
  %v925 = vpop.xlane.xlu0 %924
  %926 = vadd.xlane.f32.xlu0 %v908
  %v927 = vpop.xlane.xlu0 %926
  %928 = vadd.xlane.f32.xlu0 %v909
  %v929 = vpop.xlane.xlu0 %928
  %930 = vadd.xlane.f32.xlu0 %v910
  %v931 = vpop.xlane.xlu0 %930
  %932 = vadd.xlane.f32.xlu0 %v911
  %v933 = vpop.xlane.xlu0 %932
  %934 = vadd.xlane.f32.xlu0 %v912
  %v935 = vpop.xlane.xlu0 %934
  %936 = vadd.xlane.f32.xlu0 %v913
  %v937 = vpop.xlane.xlu0 %936
  %938 = vadd.xlane.f32.xlu0 %v914
  %v939 = vpop.xlane.xlu0 %938
  %940 = vadd.xlane.f32.xlu0 %v915
  %v941 = vpop.xlane.xlu0 %940
  %942 = vadd.xlane.f32.xlu0 %v916
  %v943 = vpop.xlane.xlu0 %942
  %944 = vadd.xlane.f32.xlu0 %v917
  %v945 = vpop.xlane.xlu0 %944
  %946 = vadd.xlane.f32.xlu0 %v918
  %v947 = vpop.xlane.xlu0 %946
  %948 = vadd.xlane.f32.xlu0 %v919
  %v949 = vpop.xlane.xlu0 %948
  %950 = vadd.xlane.f32.xlu0 %v920
  %v951 = vpop.xlane.xlu0 %950
  %952 = vadd.xlane.f32.xlu0 %v921
  %v953 = vpop.xlane.xlu0 %952
  %v954 = vmul.f32 %v923, %v403
  %v955 = vmul.f32 %v925, %v403
  %v956 = vmul.f32 %v927, %v403
  %v957 = vmul.f32 %v929, %v403
  %v958 = vmul.f32 %v931, %v403
  %v959 = vmul.f32 %v933, %v403
  %v960 = vmul.f32 %v935, %v403
  %v961 = vmul.f32 %v937, %v403
  %v962 = vmul.f32 %v939, %v403
  %v963 = vmul.f32 %v941, %v403
  %v964 = vmul.f32 %v943, %v403
  %v965 = vmul.f32 %v945, %v403
  %v966 = vmul.f32 %v947, %v403
  %v967 = vmul.f32 %v949, %v403
  %v968 = vmul.f32 %v951, %v403
  %v969 = vmul.f32 %v953, %v403
  %v970 = vadd.f32 %v954, 1e-05
  %v971 = vadd.f32 %v955, 1e-05
  %v972 = vadd.f32 %v956, 1e-05
  %v973 = vadd.f32 %v957, 1e-05
  %v974 = vadd.f32 %v958, 1e-05
  %v975 = vadd.f32 %v959, 1e-05
  %v976 = vadd.f32 %v960, 1e-05
  %v977 = vadd.f32 %v961, 1e-05
  %v978 = vadd.f32 %v962, 1e-05
  %v979 = vadd.f32 %v963, 1e-05
  %v980 = vadd.f32 %v964, 1e-05
  %v981 = vadd.f32 %v965, 1e-05
  %v982 = vadd.f32 %v966, 1e-05
  %v983 = vadd.f32 %v967, 1e-05
  %v984 = vadd.f32 %v968, 1e-05
  %v985 = vadd.f32 %v969, 1e-05
  %v986 = vrsqrt.pop %v970
  %v987 = vrsqrt.pop %v971
  %v988 = vrsqrt.pop %v972
  %v989 = vrsqrt.pop %v973
  %v990 = vrsqrt.pop %v974
  %v991 = vrsqrt.pop %v975
  %v992 = vrsqrt.pop %v976
  %v993 = vrsqrt.pop %v977
  %v994 = vrsqrt.pop %v978
  %v995 = vrsqrt.pop %v979
  %v996 = vrsqrt.pop %v980
  %v997 = vrsqrt.pop %v981
  %v998 = vrsqrt.pop %v982
  %v999 = vrsqrt.pop %v983
  %v1000 = vrsqrt.pop %v984
  %v1001 = vrsqrt.pop %v985
  %v1002 = vmul.f32 %v890, %v986
  %v1003 = vmul.f32 %v891, %v987
  %v1004 = vmul.f32 %v892, %v988
  %v1005 = vmul.f32 %v893, %v989
  %v1006 = vmul.f32 %v894, %v990
  %v1007 = vmul.f32 %v895, %v991
  %v1008 = vmul.f32 %v896, %v992
  %v1009 = vmul.f32 %v897, %v993
  %v1010 = vmul.f32 %v898, %v994
  %v1011 = vmul.f32 %v899, %v995
  %v1012 = vmul.f32 %v900, %v996
  %v1013 = vmul.f32 %v901, %v997
  %v1014 = vmul.f32 %v902, %v998
  %v1015 = vmul.f32 %v903, %v999
  %v1016 = vmul.f32 %v904, %v1000
  %v1017 = vmul.f32 %v905, %v1001
  %v1018 = vpack.c.bf16 %v1003, %v1002
  %v1019 = vpack.c.bf16 %v1005, %v1004
  %v1020 = vpack.c.bf16 %v1007, %v1006
  %v1021 = vpack.c.bf16 %v1009, %v1008
  %v1022 = vpack.c.bf16 %v1011, %v1010
  %v1023 = vpack.c.bf16 %v1013, %v1012
  %v1024 = vpack.c.bf16 %v1015, %v1014
  %v1025 = vpack.c.bf16 %v1017, %v1016
  %v1026 = vld [vmem:[%s5] sm:$0xf]
  %v1027 = vld [vmem:[%s5 + $0x4] sm:$0xf]
  %v1028 = vld [vmem:[%s5 + $0x8] sm:$0xf]
  %v1029 = vld [vmem:[%s5 + $0xc] sm:$0xf]
  %v1030 = vld [vmem:[%s5 + $0x10] sm:$0xf]
  %v1031 = vld [vmem:[%s5 + $0x14] sm:$0xf]
  %v1032 = vld [vmem:[%s5 + $0x18] sm:$0xf]
  %v1033 = vld [vmem:[%s5 + $0x1c] sm:$0xf]
  %v1034 = vld [vmem:[%s5 + $0x20] sm:$0xf]
  %v1035 = vld [vmem:[%s5 + $0x24] sm:$0xf]
  %v1036 = vld [vmem:[%s5 + $0x28] sm:$0xf]
  %v1037 = vld [vmem:[%s5 + $0x2c] sm:$0xf]
  %v1038 = vld [vmem:[%s5 + $0x30] sm:$0xf]
  %v1039 = vld [vmem:[%s5 + $0x34] sm:$0xf]
  %v1040 = vld [vmem:[%s5 + $0x38] sm:$0xf]
  %v1041 = vld [vmem:[%s5 + $0x3c] sm:$0xf]
  %v1042 = vld [vmem:[%s6] sm:$0xf]
  %v1043 = vld [vmem:[%s6 + $0x4] sm:$0xf]
  %v1044 = vld [vmem:[%s6 + $0x8] sm:$0xf]
  %v1045 = vld [vmem:[%s6 + $0xc] sm:$0xf]
  %v1046 = vld [vmem:[%s6 + $0x10] sm:$0xf]
  %v1047 = vld [vmem:[%s6 + $0x14] sm:$0xf]
  %v1048 = vld [vmem:[%s6 + $0x18] sm:$0xf]
  %v1049 = vld [vmem:[%s6 + $0x1c] sm:$0xf]
  %v1050 = vld [vmem:[%s6 + $0x20] sm:$0xf]
  %v1051 = vld [vmem:[%s6 + $0x24] sm:$0xf]
  %v1052 = vld [vmem:[%s6 + $0x28] sm:$0xf]
  %v1053 = vld [vmem:[%s6 + $0x2c] sm:$0xf]
  %v1054 = vld [vmem:[%s6 + $0x30] sm:$0xf]
  %v1055 = vld [vmem:[%s6 + $0x34] sm:$0xf]
  %v1056 = vld [vmem:[%s6 + $0x38] sm:$0xf]
  %v1057 = vld [vmem:[%s6 + $0x3c] sm:$0xf]
  %v1074 = vunpack.c.l.b16 %v1042
  %v1075 = vunpack.c.l.b16 %v1043
  %v1076 = vunpack.c.l.b16 %v1044
  %v1077 = vunpack.c.l.b16 %v1045
  %v1078 = vunpack.c.l.b16 %v1046
  %v1079 = vunpack.c.l.b16 %v1047
  %v1080 = vunpack.c.l.b16 %v1048
  %v1081 = vunpack.c.l.b16 %v1049
  %v1082 = vunpack.c.l.b16 %v1050
  %v1083 = vunpack.c.l.b16 %v1051
  %v1084 = vunpack.c.l.b16 %v1052
  %v1085 = vunpack.c.l.b16 %v1053
  %v1086 = vunpack.c.l.b16 %v1054
  %v1087 = vunpack.c.l.b16 %v1055
  %v1088 = vunpack.c.l.b16 %v1056
  %v1089 = vunpack.c.l.b16 %v1057
  %v1090 = vpack.c.b16 %v1075, %v1074
  %v1091 = vpack.c.b16 %v1077, %v1076
  %v1092 = vpack.c.b16 %v1079, %v1078
  %v1093 = vpack.c.b16 %v1081, %v1080
  %v1094 = vpack.c.b16 %v1083, %v1082
  %v1095 = vpack.c.b16 %v1085, %v1084
  %v1096 = vpack.c.b16 %v1087, %v1086
  %v1097 = vpack.c.b16 %v1089, %v1088
  %1106 = vmatprep.subr.bf16.mxu0 0
  %1107 = vmatpush1.bf16.msra.mxu0 %v1090
  %1108 = vmatprep.subr.bf16.mxu0 0
  %1109 = vmatpush1.bf16.msra.mxu0 %v1091
  %1110 = vmatprep.subr.bf16.mxu0 0
  %1111 = vmatpush1.bf16.msra.mxu0 %v1092
  %1112 = vmatprep.subr.bf16.mxu0 0
  %1113 = vmatpush1.bf16.msra.mxu0 %v1093
  %1114 = vmatprep.subr.bf16.mxu0 0
  %1115 = vmatpush1.bf16.msra.mxu0 %v1094
  %1116 = vmatprep.subr.bf16.mxu0 0
  %1117 = vmatpush1.bf16.msra.mxu0 %v1095
  %1118 = vmatprep.subr.bf16.mxu0 0
  %1119 = vmatpush1.bf16.msra.mxu0 %v1096
  %1120 = vmatprep.subr.bf16.mxu0 0
  %1121 = vmatpush1.bf16.msra.mxu0 %v1097
  %1122 = vmatprep.subr.bf16.mxu0 0
  %1123 = vmatpush1.bf16.msra.mxu0 0
  %1124 = vmatprep.subr.bf16.mxu0 0
  %1125 = vmatpush1.bf16.msra.mxu0 0
  %1126 = vmatprep.subr.bf16.mxu0 0
  %1127 = vmatpush1.bf16.msra.mxu0 0
  %1128 = vmatprep.subr.bf16.mxu0 0
  %1129 = vmatpush1.bf16.msra.mxu0 0
  %1130 = vmatprep.subr.bf16.mxu0 0
  %1131 = vmatpush1.bf16.msra.mxu0 0
  %1132 = vmatprep.subr.bf16.mxu0 0
  %1133 = vmatpush1.bf16.msra.mxu0 0
  %1134 = vmatprep.subr.bf16.mxu0 0
  %1135 = vmatpush1.bf16.msra.mxu0 0
  %1136 = vmatprep.subr.bf16.mxu0 0
  %1137 = vmatpush1.bf16.msra.mxu0 0
  %1138 = vmatprep.mubr.bf16.mxu0 0
  %1139 = vmatmul.mubr.bf16.gmra.mrb[0].mxu0 %v737
  %v1140 = vpop.f32.mrb[0].mxu0
  %v1141 = vadd.f32 0.0, %v1140
  %v1142 = vpop.f32.mrb[0].mxu0
  %v1143 = vpop.f32.mrb[0].mxu0
  %v1144 = vadd.f32 0.0, %v1143
  %v1145 = vpop.f32.mrb[0].mxu0
  %1146 = vmatprep.mubr.bf16.mxu0 0
  %1147 = vmatmul.mubr.bf16.gmra.mrb[0].mxu0 %v738
  %v1148 = vpop.f32.mrb[0].mxu0
  %v1149 = vadd.f32 0.0, %v1148
  %v1150 = vpop.f32.mrb[0].mxu0
  %v1151 = vpop.f32.mrb[0].mxu0
  %v1152 = vadd.f32 0.0, %v1151
  %v1153 = vpop.f32.mrb[0].mxu0
  %1154 = vmatprep.mubr.bf16.mxu0 0
  %1155 = vmatmul.mubr.bf16.gmra.mrb[0].mxu0 %v739
  %v1156 = vpop.f32.mrb[0].mxu0
  %v1157 = vadd.f32 0.0, %v1156
  %v1158 = vpop.f32.mrb[0].mxu0
  %v1159 = vpop.f32.mrb[0].mxu0
  %v1160 = vadd.f32 0.0, %v1159
  %v1161 = vpop.f32.mrb[0].mxu0
  %1162 = vmatprep.mubr.bf16.mxu0 0
  %1163 = vmatmul.mubr.bf16.gmra.mrb[0].mxu0 %v740
  %v1164 = vpop.f32.mrb[0].mxu0
  %v1165 = vadd.f32 0.0, %v1164
  %v1166 = vpop.f32.mrb[0].mxu0
  %v1167 = vpop.f32.mrb[0].mxu0
  %v1168 = vadd.f32 0.0, %v1167
  %v1169 = vpop.f32.mrb[0].mxu0
  %1170 = vmatprep.mubr.bf16.mxu0 0
  %1171 = vmatmul.mubr.bf16.gmra.mrb[0].mxu0 %v741
  %v1172 = vpop.f32.mrb[0].mxu0
  %v1173 = vadd.f32 0.0, %v1172
  %v1174 = vpop.f32.mrb[0].mxu0
  %v1175 = vpop.f32.mrb[0].mxu0
  %v1176 = vadd.f32 0.0, %v1175
  %v1177 = vpop.f32.mrb[0].mxu0
  %1178 = vmatprep.mubr.bf16.mxu0 0
  %1179 = vmatmul.mubr.bf16.gmra.mrb[0].mxu0 %v742
  %v1180 = vpop.f32.mrb[0].mxu0
  %v1181 = vadd.f32 0.0, %v1180
  %v1182 = vpop.f32.mrb[0].mxu0
  %v1183 = vpop.f32.mrb[0].mxu0
  %v1184 = vadd.f32 0.0, %v1183
  %v1185 = vpop.f32.mrb[0].mxu0
  %1186 = vmatprep.mubr.bf16.mxu0 0
  %1187 = vmatmul.mubr.bf16.gmra.mrb[0].mxu0 %v743
  %v1188 = vpop.f32.mrb[0].mxu0
  %v1189 = vadd.f32 0.0, %v1188
  %v1190 = vpop.f32.mrb[0].mxu0
  %v1191 = vpop.f32.mrb[0].mxu0
  %v1192 = vadd.f32 0.0, %v1191
  %v1193 = vpop.f32.mrb[0].mxu0
  %1194 = vmatprep.mubr.bf16.mxu0 0
  %1195 = vmatmul.mubr.bf16.gmra.mrb[0].mxu0 %v744
  %v1196 = vpop.f32.mrb[0].mxu0
  %v1197 = vadd.f32 0.0, %v1196
  %v1198 = vpop.f32.mrb[0].mxu0
  %v1199 = vpop.f32.mrb[0].mxu0
  %v1200 = vadd.f32 0.0, %v1199
  %v1201 = vpop.f32.mrb[0].mxu0
  %1202 = vdwg.mxu0
  %v1219 = vunpack.c.l.b16 %v1026
  %v1220 = vunpack.c.l.b16 %v1027
  %v1221 = vunpack.c.l.b16 %v1028
  %v1222 = vunpack.c.l.b16 %v1029
  %v1223 = vunpack.c.l.b16 %v1030
  %v1224 = vunpack.c.l.b16 %v1031
  %v1225 = vunpack.c.l.b16 %v1032
  %v1226 = vunpack.c.l.b16 %v1033
  %v1227 = vunpack.c.l.b16 %v1034
  %v1228 = vunpack.c.l.b16 %v1035
  %v1229 = vunpack.c.l.b16 %v1036
  %v1230 = vunpack.c.l.b16 %v1037
  %v1231 = vunpack.c.l.b16 %v1038
  %v1232 = vunpack.c.l.b16 %v1039
  %v1233 = vunpack.c.l.b16 %v1040
  %v1234 = vunpack.c.l.b16 %v1041
  %v1235 = vpack.c.b16 %v1220, %v1219
  %v1236 = vpack.c.b16 %v1222, %v1221
  %v1237 = vpack.c.b16 %v1224, %v1223
  %v1238 = vpack.c.b16 %v1226, %v1225
  %v1239 = vpack.c.b16 %v1228, %v1227
  %v1240 = vpack.c.b16 %v1230, %v1229
  %v1241 = vpack.c.b16 %v1232, %v1231
  %v1242 = vpack.c.b16 %v1234, %v1233
  %1251 = vmatprep.subr.bf16.mxu0 0
  %1252 = vmatpush1.bf16.msra.mxu0 %v1235
  %1253 = vmatprep.subr.bf16.mxu0 0
  %1254 = vmatpush1.bf16.msra.mxu0 %v1236
  %1255 = vmatprep.subr.bf16.mxu0 0
  %1256 = vmatpush1.bf16.msra.mxu0 %v1237
  %1257 = vmatprep.subr.bf16.mxu0 0
  %1258 = vmatpush1.bf16.msra.mxu0 %v1238
  %1259 = vmatprep.subr.bf16.mxu0 0
  %1260 = vmatpush1.bf16.msra.mxu0 %v1239
  %1261 = vmatprep.subr.bf16.mxu0 0
  %1262 = vmatpush1.bf16.msra.mxu0 %v1240
  %1263 = vmatprep.subr.bf16.mxu0 0
  %1264 = vmatpush1.bf16.msra.mxu0 %v1241
  %1265 = vmatprep.subr.bf16.mxu0 0
  %1266 = vmatpush1.bf16.msra.mxu0 %v1242
  %1267 = vmatprep.subr.bf16.mxu0 0
  %1268 = vmatpush1.bf16.msra.mxu0 0
  %1269 = vmatprep.subr.bf16.mxu0 0
  %1270 = vmatpush1.bf16.msra.mxu0 0
  %1271 = vmatprep.subr.bf16.mxu0 0
  %1272 = vmatpush1.bf16.msra.mxu0 0
  %1273 = vmatprep.subr.bf16.mxu0 0
  %1274 = vmatpush1.bf16.msra.mxu0 0
  %1275 = vmatprep.subr.bf16.mxu0 0
  %1276 = vmatpush1.bf16.msra.mxu0 0
  %1277 = vmatprep.subr.bf16.mxu0 0
  %1278 = vmatpush1.bf16.msra.mxu0 0
  %1279 = vmatprep.subr.bf16.mxu0 0
  %1280 = vmatpush1.bf16.msra.mxu0 0
  %1281 = vmatprep.subr.bf16.mxu0 0
  %1282 = vmatpush1.bf16.msra.mxu0 0
  %1283 = vmatprep.mubr.bf16.mxu0 0
  %1284 = vmatmul.mubr.bf16.gmra.mrb[0].mxu0 %v1018
  %v1285 = vpop.f32.mrb[0].mxu0
  %v1286 = vadd.f32 %v1141, %v1285
  %v1287 = vpop.f32.mrb[0].mxu0
  %v1288 = vpop.f32.mrb[0].mxu0
  %v1289 = vadd.f32 %v1144, %v1288
  %v1290 = vpop.f32.mrb[0].mxu0
  %1291 = vmatprep.mubr.bf16.mxu0 0
  %1292 = vmatmul.mubr.bf16.gmra.mrb[0].mxu0 %v1019
  %v1293 = vpop.f32.mrb[0].mxu0
  %v1294 = vadd.f32 %v1149, %v1293
  %v1295 = vpop.f32.mrb[0].mxu0
  %v1296 = vpop.f32.mrb[0].mxu0
  %v1297 = vadd.f32 %v1152, %v1296
  %v1298 = vpop.f32.mrb[0].mxu0
  %1299 = vmatprep.mubr.bf16.mxu0 0
  %1300 = vmatmul.mubr.bf16.gmra.mrb[0].mxu0 %v1020
  %v1301 = vpop.f32.mrb[0].mxu0
  %v1302 = vadd.f32 %v1157, %v1301
  %v1303 = vpop.f32.mrb[0].mxu0
  %v1304 = vpop.f32.mrb[0].mxu0
  %v1305 = vadd.f32 %v1160, %v1304
  %v1306 = vpop.f32.mrb[0].mxu0
  %1307 = vmatprep.mubr.bf16.mxu0 0
  %1308 = vmatmul.mubr.bf16.gmra.mrb[0].mxu0 %v1021
  %v1309 = vpop.f32.mrb[0].mxu0
  %v1310 = vadd.f32 %v1165, %v1309
  %v1311 = vpop.f32.mrb[0].mxu0
  %v1312 = vpop.f32.mrb[0].mxu0
  %v1313 = vadd.f32 %v1168, %v1312
  %v1314 = vpop.f32.mrb[0].mxu0
  %1315 = vmatprep.mubr.bf16.mxu0 0
  %1316 = vmatmul.mubr.bf16.gmra.mrb[0].mxu0 %v1022
  %v1317 = vpop.f32.mrb[0].mxu0
  %v1318 = vadd.f32 %v1173, %v1317
  %v1319 = vpop.f32.mrb[0].mxu0
  %v1320 = vpop.f32.mrb[0].mxu0
  %v1321 = vadd.f32 %v1176, %v1320
  %v1322 = vpop.f32.mrb[0].mxu0
  %1323 = vmatprep.mubr.bf16.mxu0 0
  %1324 = vmatmul.mubr.bf16.gmra.mrb[0].mxu0 %v1023
  %v1325 = vpop.f32.mrb[0].mxu0
  %v1326 = vadd.f32 %v1181, %v1325
  %v1327 = vpop.f32.mrb[0].mxu0
  %v1328 = vpop.f32.mrb[0].mxu0
  %v1329 = vadd.f32 %v1184, %v1328
  %v1330 = vpop.f32.mrb[0].mxu0
  %1331 = vmatprep.mubr.bf16.mxu0 0
  %1332 = vmatmul.mubr.bf16.gmra.mrb[0].mxu0 %v1024
  %v1333 = vpop.f32.mrb[0].mxu0
  %v1334 = vadd.f32 %v1189, %v1333
  %v1335 = vpop.f32.mrb[0].mxu0
  %v1336 = vpop.f32.mrb[0].mxu0
  %v1337 = vadd.f32 %v1192, %v1336
  %v1338 = vpop.f32.mrb[0].mxu0
  %1339 = vmatprep.mubr.bf16.mxu0 0
  %1340 = vmatmul.mubr.bf16.gmra.mrb[0].mxu0 %v1025
  %v1341 = vpop.f32.mrb[0].mxu0
  %v1342 = vadd.f32 %v1197, %v1341
  %v1343 = vpop.f32.mrb[0].mxu0
  %v1344 = vpop.f32.mrb[0].mxu0
  %v1345 = vadd.f32 %v1200, %v1344
  %v1346 = vpop.f32.mrb[0].mxu0
  %1347 = vdwg.mxu0
  %v1348 = vlaneseq
  %v1349 = vshrl.u32 %v1348, 7
  %v1350 = vsub.s32 2, %v1349
  %v1351 = vrot.slane %v27, %v1350
  %v1352 = vadd.f32 %v1286, %v1351
  %v1353 = vadd.f32 %v1289, %v1351
  %v1354 = vadd.f32 %v1294, %v1351
  %v1355 = vadd.f32 %v1297, %v1351
  %v1356 = vadd.f32 %v1302, %v1351
  %v1357 = vadd.f32 %v1305, %v1351
  %v1358 = vadd.f32 %v1310, %v1351
  %v1359 = vadd.f32 %v1313, %v1351
  %v1360 = vadd.f32 %v1318, %v1351
  %v1361 = vadd.f32 %v1321, %v1351
  %v1362 = vadd.f32 %v1326, %v1351
  %v1363 = vadd.f32 %v1329, %v1351
  %v1364 = vadd.f32 %v1334, %v1351
  %v1365 = vadd.f32 %v1337, %v1351
  %v1366 = vadd.f32 %v1342, %v1351
  %v1367 = vadd.f32 %v1345, %v1351
  %v1368 = vmax.f32 %v1352, 0.0
  %v1369 = vmax.f32 %v1353, 0.0
  %v1370 = vmax.f32 %v1354, 0.0
  %v1371 = vmax.f32 %v1355, 0.0
  %v1372 = vmax.f32 %v1356, 0.0
  %v1373 = vmax.f32 %v1357, 0.0
  %v1374 = vmax.f32 %v1358, 0.0
  %v1375 = vmax.f32 %v1359, 0.0
  %v1376 = vmax.f32 %v1360, 0.0
  %v1377 = vmax.f32 %v1361, 0.0
  %v1378 = vmax.f32 %v1362, 0.0
  %v1379 = vmax.f32 %v1363, 0.0
  %v1380 = vmax.f32 %v1364, 0.0
  %v1381 = vmax.f32 %v1365, 0.0
  %v1382 = vmax.f32 %v1366, 0.0
  %v1383 = vmax.f32 %v1367, 0.0
  %v1384 = vpack.c.bf16 %v1369, %v1368
  %v1385 = vpack.c.bf16 %v1371, %v1370
  %v1386 = vpack.c.bf16 %v1373, %v1372
  %v1387 = vpack.c.bf16 %v1375, %v1374
  %v1388 = vpack.c.bf16 %v1377, %v1376
  %v1389 = vpack.c.bf16 %v1379, %v1378
  %v1390 = vpack.c.bf16 %v1381, %v1380
  %v1391 = vpack.c.bf16 %v1383, %v1382
  %1392 = vmatprep.subr.bf16.mxu0 0
  %1393 = vmatpush1.bf16.msra.mxu0 %v1384
  %1394 = vmatprep.subr.bf16.mxu0 0
  %1395 = vmatpush1.bf16.msra.mxu0 %v1385
  %1396 = vmatprep.subr.bf16.mxu0 0
  %1397 = vmatpush1.bf16.msra.mxu0 %v1386
  %1398 = vmatprep.subr.bf16.mxu0 0
  %1399 = vmatpush1.bf16.msra.mxu0 %v1387
  %1400 = vmatprep.subr.bf16.mxu0 0
  %1401 = vmatpush1.bf16.msra.mxu0 %v1388
  %1402 = vmatprep.subr.bf16.mxu0 0
  %1403 = vmatpush1.bf16.msra.mxu0 %v1389
  %1404 = vmatprep.subr.bf16.mxu0 0
  %1405 = vmatpush1.bf16.msra.mxu0 %v1390
  %1406 = vmatprep.subr.bf16.mxu0 0
  %1407 = vmatpush1.bf16.msra.mxu0 %v1391
  %1408 = vmatprep.subr.bf16.mxu0 0
  %1409 = vmatpush1.bf16.msra.mxu0 0
  %1410 = vmatprep.subr.bf16.mxu0 0
  %1411 = vmatpush1.bf16.msra.mxu0 0
  %1412 = vmatprep.subr.bf16.mxu0 0
  %1413 = vmatpush1.bf16.msra.mxu0 0
  %1414 = vmatprep.subr.bf16.mxu0 0
  %1415 = vmatpush1.bf16.msra.mxu0 0
  %1416 = vmatprep.subr.bf16.mxu0 0
  %1417 = vmatpush1.bf16.msra.mxu0 0
  %1418 = vmatprep.subr.bf16.mxu0 0
  %1419 = vmatpush1.bf16.msra.mxu0 0
  %1420 = vmatprep.subr.bf16.mxu0 0
  %1421 = vmatpush1.bf16.msra.mxu0 0
  %1422 = vmatprep.subr.bf16.mxu0 0
  %1423 = vmatpush1.bf16.msra.mxu0 0
  %1424 = vmatprep.mubr.bf16.mxu0 0
  %1425 = vmatmul.mubr.bf16.gmra.mrb[0].mxu0 %v258
  %v1426 = vpop.f32.mrb[0].mxu0
  %v1427 = vadd.f32 0.0, %v1426
  %v1428 = vpop.f32.mrb[0].mxu0
  %v1429 = vpop.f32.mrb[0].mxu0
  %v1430 = vadd.f32 0.0, %v1429
  %v1431 = vpop.f32.mrb[0].mxu0
  %1432 = vmatprep.mubr.bf16.mxu0 0
  %1433 = vmatmul.mubr.bf16.gmra.mrb[0].mxu0 %v259
  %v1434 = vpop.f32.mrb[0].mxu0
  %v1435 = vadd.f32 0.0, %v1434
  %v1436 = vpop.f32.mrb[0].mxu0
  %v1437 = vpop.f32.mrb[0].mxu0
  %v1438 = vadd.f32 0.0, %v1437
  %v1439 = vpop.f32.mrb[0].mxu0
  %1440 = vmatprep.mubr.bf16.mxu0 0
  %1441 = vmatmul.mubr.bf16.gmra.mrb[0].mxu0 %v260
  %v1442 = vpop.f32.mrb[0].mxu0
  %v1443 = vadd.f32 0.0, %v1442
  %v1444 = vpop.f32.mrb[0].mxu0
  %v1445 = vpop.f32.mrb[0].mxu0
  %v1446 = vadd.f32 0.0, %v1445
  %v1447 = vpop.f32.mrb[0].mxu0
  %1448 = vmatprep.mubr.bf16.mxu0 0
  %1449 = vmatmul.mubr.bf16.gmra.mrb[0].mxu0 %v261
  %v1450 = vpop.f32.mrb[0].mxu0
  %v1451 = vadd.f32 0.0, %v1450
  %v1452 = vpop.f32.mrb[0].mxu0
  %v1453 = vpop.f32.mrb[0].mxu0
  %v1454 = vadd.f32 0.0, %v1453
  %v1455 = vpop.f32.mrb[0].mxu0
  %1456 = vmatprep.mubr.bf16.mxu0 0
  %1457 = vmatmul.mubr.bf16.gmra.mrb[0].mxu0 %v262
  %v1458 = vpop.f32.mrb[0].mxu0
  %v1459 = vadd.f32 0.0, %v1458
  %v1460 = vpop.f32.mrb[0].mxu0
  %v1461 = vpop.f32.mrb[0].mxu0
  %v1462 = vadd.f32 0.0, %v1461
  %v1463 = vpop.f32.mrb[0].mxu0
  %1464 = vmatprep.mubr.bf16.mxu0 0
  %1465 = vmatmul.mubr.bf16.gmra.mrb[0].mxu0 %v263
  %v1466 = vpop.f32.mrb[0].mxu0
  %v1467 = vadd.f32 0.0, %v1466
  %v1468 = vpop.f32.mrb[0].mxu0
  %v1469 = vpop.f32.mrb[0].mxu0
  %v1470 = vadd.f32 0.0, %v1469
  %v1471 = vpop.f32.mrb[0].mxu0
  %1472 = vmatprep.mubr.bf16.mxu0 0
  %1473 = vmatmul.mubr.bf16.gmra.mrb[0].mxu0 %v264
  %v1474 = vpop.f32.mrb[0].mxu0
  %v1475 = vadd.f32 0.0, %v1474
  %v1476 = vpop.f32.mrb[0].mxu0
  %v1477 = vpop.f32.mrb[0].mxu0
  %v1478 = vadd.f32 0.0, %v1477
  %v1479 = vpop.f32.mrb[0].mxu0
  %1480 = vmatprep.mubr.bf16.mxu0 0
  %1481 = vmatmul.mubr.bf16.gmra.mrb[0].mxu0 %v265
  %v1482 = vpop.f32.mrb[0].mxu0
  %v1483 = vadd.f32 0.0, %v1482
  %v1484 = vpop.f32.mrb[0].mxu0
  %v1485 = vpop.f32.mrb[0].mxu0
  %v1486 = vadd.f32 0.0, %v1485
  %v1487 = vpop.f32.mrb[0].mxu0
  %1488 = vdwg.mxu0
  %1489 = vadd.xlane.f32.xlu0 %v1427
  %v1490 = vpop.xlane.xlu0 %1489
  %1491 = vadd.xlane.f32.xlu0 %v1430
  %v1492 = vpop.xlane.xlu0 %1491
  %1493 = vadd.xlane.f32.xlu0 %v1435
  %v1494 = vpop.xlane.xlu0 %1493
  %1495 = vadd.xlane.f32.xlu0 %v1438
  %v1496 = vpop.xlane.xlu0 %1495
  %1497 = vadd.xlane.f32.xlu0 %v1443
  %v1498 = vpop.xlane.xlu0 %1497
  %1499 = vadd.xlane.f32.xlu0 %v1446
  %v1500 = vpop.xlane.xlu0 %1499
  %1501 = vadd.xlane.f32.xlu0 %v1451
  %v1502 = vpop.xlane.xlu0 %1501
  %1503 = vadd.xlane.f32.xlu0 %v1454
  %v1504 = vpop.xlane.xlu0 %1503
  %1505 = vadd.xlane.f32.xlu0 %v1459
  %v1506 = vpop.xlane.xlu0 %1505
  %1507 = vadd.xlane.f32.xlu0 %v1462
  %v1508 = vpop.xlane.xlu0 %1507
  %1509 = vadd.xlane.f32.xlu0 %v1467
  %v1510 = vpop.xlane.xlu0 %1509
  %1511 = vadd.xlane.f32.xlu0 %v1470
  %v1512 = vpop.xlane.xlu0 %1511
  %1513 = vadd.xlane.f32.xlu0 %v1475
  %v1514 = vpop.xlane.xlu0 %1513
  %1515 = vadd.xlane.f32.xlu0 %v1478
  %v1516 = vpop.xlane.xlu0 %1515
  %1517 = vadd.xlane.f32.xlu0 %v1483
  %v1518 = vpop.xlane.xlu0 %1517
  %1519 = vadd.xlane.f32.xlu0 %v1486
  %v1520 = vpop.xlane.xlu0 %1519
  %v1521 = vmul.f32 %v1490, %v403
  %v1522 = vmul.f32 %v1492, %v403
  %v1523 = vmul.f32 %v1494, %v403
  %v1524 = vmul.f32 %v1496, %v403
  %v1525 = vmul.f32 %v1498, %v403
  %v1526 = vmul.f32 %v1500, %v403
  %v1527 = vmul.f32 %v1502, %v403
  %v1528 = vmul.f32 %v1504, %v403
  %v1529 = vmul.f32 %v1506, %v403
  %v1530 = vmul.f32 %v1508, %v403
  %v1531 = vmul.f32 %v1510, %v403
  %v1532 = vmul.f32 %v1512, %v403
  %v1533 = vmul.f32 %v1514, %v403
  %v1534 = vmul.f32 %v1516, %v403
  %v1535 = vmul.f32 %v1518, %v403
  %v1536 = vmul.f32 %v1520, %v403
  %v1537 = vsub.f32 %v1427, %v1521
  %v1538 = vsub.f32 %v1430, %v1522
  %v1539 = vsub.f32 %v1435, %v1523
  %v1540 = vsub.f32 %v1438, %v1524
  %v1541 = vsub.f32 %v1443, %v1525
  %v1542 = vsub.f32 %v1446, %v1526
  %v1543 = vsub.f32 %v1451, %v1527
  %v1544 = vsub.f32 %v1454, %v1528
  %v1545 = vsub.f32 %v1459, %v1529
  %v1546 = vsub.f32 %v1462, %v1530
  %v1547 = vsub.f32 %v1467, %v1531
  %v1548 = vsub.f32 %v1470, %v1532
  %v1549 = vsub.f32 %v1475, %v1533
  %v1550 = vsub.f32 %v1478, %v1534
  %v1551 = vsub.f32 %v1483, %v1535
  %v1552 = vsub.f32 %v1486, %v1536
  %v1553 = vmul.f32 %v1537, %v1537
  %v1554 = vmul.f32 %v1538, %v1538
  %v1555 = vmul.f32 %v1539, %v1539
  %v1556 = vmul.f32 %v1540, %v1540
  %v1557 = vmul.f32 %v1541, %v1541
  %v1558 = vmul.f32 %v1542, %v1542
  %v1559 = vmul.f32 %v1543, %v1543
  %v1560 = vmul.f32 %v1544, %v1544
  %v1561 = vmul.f32 %v1545, %v1545
  %v1562 = vmul.f32 %v1546, %v1546
  %v1563 = vmul.f32 %v1547, %v1547
  %v1564 = vmul.f32 %v1548, %v1548
  %v1565 = vmul.f32 %v1549, %v1549
  %v1566 = vmul.f32 %v1550, %v1550
  %v1567 = vmul.f32 %v1551, %v1551
  %v1568 = vmul.f32 %v1552, %v1552
  %1569 = vadd.xlane.f32.xlu0 %v1553
  %v1570 = vpop.xlane.xlu0 %1569
  %1571 = vadd.xlane.f32.xlu0 %v1554
  %v1572 = vpop.xlane.xlu0 %1571
  %1573 = vadd.xlane.f32.xlu0 %v1555
  %v1574 = vpop.xlane.xlu0 %1573
  %1575 = vadd.xlane.f32.xlu0 %v1556
  %v1576 = vpop.xlane.xlu0 %1575
  %1577 = vadd.xlane.f32.xlu0 %v1557
  %v1578 = vpop.xlane.xlu0 %1577
  %1579 = vadd.xlane.f32.xlu0 %v1558
  %v1580 = vpop.xlane.xlu0 %1579
  %1581 = vadd.xlane.f32.xlu0 %v1559
  %v1582 = vpop.xlane.xlu0 %1581
  %1583 = vadd.xlane.f32.xlu0 %v1560
  %v1584 = vpop.xlane.xlu0 %1583
  %1585 = vadd.xlane.f32.xlu0 %v1561
  %v1586 = vpop.xlane.xlu0 %1585
  %1587 = vadd.xlane.f32.xlu0 %v1562
  %v1588 = vpop.xlane.xlu0 %1587
  %1589 = vadd.xlane.f32.xlu0 %v1563
  %v1590 = vpop.xlane.xlu0 %1589
  %1591 = vadd.xlane.f32.xlu0 %v1564
  %v1592 = vpop.xlane.xlu0 %1591
  %1593 = vadd.xlane.f32.xlu0 %v1565
  %v1594 = vpop.xlane.xlu0 %1593
  %1595 = vadd.xlane.f32.xlu0 %v1566
  %v1596 = vpop.xlane.xlu0 %1595
  %1597 = vadd.xlane.f32.xlu0 %v1567
  %v1598 = vpop.xlane.xlu0 %1597
  %1599 = vadd.xlane.f32.xlu0 %v1568
  %v1600 = vpop.xlane.xlu0 %1599
  %v1601 = vmul.f32 %v1570, %v403
  %v1602 = vmul.f32 %v1572, %v403
  %v1603 = vmul.f32 %v1574, %v403
  %v1604 = vmul.f32 %v1576, %v403
  %v1605 = vmul.f32 %v1578, %v403
  %v1606 = vmul.f32 %v1580, %v403
  %v1607 = vmul.f32 %v1582, %v403
  %v1608 = vmul.f32 %v1584, %v403
  %v1609 = vmul.f32 %v1586, %v403
  %v1610 = vmul.f32 %v1588, %v403
  %v1611 = vmul.f32 %v1590, %v403
  %v1612 = vmul.f32 %v1592, %v403
  %v1613 = vmul.f32 %v1594, %v403
  %v1614 = vmul.f32 %v1596, %v403
  %v1615 = vmul.f32 %v1598, %v403
  %v1616 = vmul.f32 %v1600, %v403
  %v1617 = vadd.f32 %v1601, 1e-05
  %v1618 = vadd.f32 %v1602, 1e-05
  %v1619 = vadd.f32 %v1603, 1e-05
  %v1620 = vadd.f32 %v1604, 1e-05
  %v1621 = vadd.f32 %v1605, 1e-05
  %v1622 = vadd.f32 %v1606, 1e-05
  %v1623 = vadd.f32 %v1607, 1e-05
  %v1624 = vadd.f32 %v1608, 1e-05
  %v1625 = vadd.f32 %v1609, 1e-05
  %v1626 = vadd.f32 %v1610, 1e-05
  %v1627 = vadd.f32 %v1611, 1e-05
  %v1628 = vadd.f32 %v1612, 1e-05
  %v1629 = vadd.f32 %v1613, 1e-05
  %v1630 = vadd.f32 %v1614, 1e-05
  %v1631 = vadd.f32 %v1615, 1e-05
  %v1632 = vadd.f32 %v1616, 1e-05
  %v1633 = vrsqrt.pop %v1617
  %v1634 = vrsqrt.pop %v1618
  %v1635 = vrsqrt.pop %v1619
  %v1636 = vrsqrt.pop %v1620
  %v1637 = vrsqrt.pop %v1621
  %v1638 = vrsqrt.pop %v1622
  %v1639 = vrsqrt.pop %v1623
  %v1640 = vrsqrt.pop %v1624
  %v1641 = vrsqrt.pop %v1625
  %v1642 = vrsqrt.pop %v1626
  %v1643 = vrsqrt.pop %v1627
  %v1644 = vrsqrt.pop %v1628
  %v1645 = vrsqrt.pop %v1629
  %v1646 = vrsqrt.pop %v1630
  %v1647 = vrsqrt.pop %v1631
  %v1648 = vrsqrt.pop %v1632
  %v1649 = vmul.f32 %v1537, %v1633
  %v1650 = vmul.f32 %v1538, %v1634
  %v1651 = vmul.f32 %v1539, %v1635
  %v1652 = vmul.f32 %v1540, %v1636
  %v1653 = vmul.f32 %v1541, %v1637
  %v1654 = vmul.f32 %v1542, %v1638
  %v1655 = vmul.f32 %v1543, %v1639
  %v1656 = vmul.f32 %v1544, %v1640
  %v1657 = vmul.f32 %v1545, %v1641
  %v1658 = vmul.f32 %v1546, %v1642
  %v1659 = vmul.f32 %v1547, %v1643
  %v1660 = vmul.f32 %v1548, %v1644
  %v1661 = vmul.f32 %v1549, %v1645
  %v1662 = vmul.f32 %v1550, %v1646
  %v1663 = vmul.f32 %v1551, %v1647
  %v1664 = vmul.f32 %v1552, %v1648
  %v1665 = vlaneseq
  %v1666 = vshrl.u32 %v1665, 7
  %v1667 = vsub.s32 3, %v1666
  %v1668 = vrot.slane %v27, %v1667
  %v1669 = vmul.f32 %v1649, %v1668
  %v1670 = vmul.f32 %v1650, %v1668
  %v1671 = vmul.f32 %v1651, %v1668
  %v1672 = vmul.f32 %v1652, %v1668
  %v1673 = vmul.f32 %v1653, %v1668
  %v1674 = vmul.f32 %v1654, %v1668
  %v1675 = vmul.f32 %v1655, %v1668
  %v1676 = vmul.f32 %v1656, %v1668
  %v1677 = vmul.f32 %v1657, %v1668
  %v1678 = vmul.f32 %v1658, %v1668
  %v1679 = vmul.f32 %v1659, %v1668
  %v1680 = vmul.f32 %v1660, %v1668
  %v1681 = vmul.f32 %v1661, %v1668
  %v1682 = vmul.f32 %v1662, %v1668
  %v1683 = vmul.f32 %v1663, %v1668
  %v1684 = vmul.f32 %v1664, %v1668
  %v1685 = vlaneseq
  %v1686 = vshrl.u32 %v1685, 7
  %v1687 = vsub.s32 4, %v1686
  %v1688 = vrot.slane %v27, %v1687
  %v1689 = vmul.f32 %v1368, %v1688
  %v1690 = vmul.f32 %v1369, %v1688
  %v1691 = vmul.f32 %v1370, %v1688
  %v1692 = vmul.f32 %v1371, %v1688
  %v1693 = vmul.f32 %v1372, %v1688
  %v1694 = vmul.f32 %v1373, %v1688
  %v1695 = vmul.f32 %v1374, %v1688
  %v1696 = vmul.f32 %v1375, %v1688
  %v1697 = vmul.f32 %v1376, %v1688
  %v1698 = vmul.f32 %v1377, %v1688
  %v1699 = vmul.f32 %v1378, %v1688
  %v1700 = vmul.f32 %v1379, %v1688
  %v1701 = vmul.f32 %v1380, %v1688
  %v1702 = vmul.f32 %v1381, %v1688
  %v1703 = vmul.f32 %v1382, %v1688
  %v1704 = vmul.f32 %v1383, %v1688
  %v1705 = vadd.f32 %v1669, %v1689
  %v1706 = vadd.f32 %v1670, %v1690
  %v1707 = vadd.f32 %v1671, %v1691
  %v1708 = vadd.f32 %v1672, %v1692
  %v1709 = vadd.f32 %v1673, %v1693
  %v1710 = vadd.f32 %v1674, %v1694
  %v1711 = vadd.f32 %v1675, %v1695
  %v1712 = vadd.f32 %v1676, %v1696
  %v1713 = vadd.f32 %v1677, %v1697
  %v1714 = vadd.f32 %v1678, %v1698
  %v1715 = vadd.f32 %v1679, %v1699
  %v1716 = vadd.f32 %v1680, %v1700
  %v1717 = vadd.f32 %v1681, %v1701
  %v1718 = vadd.f32 %v1682, %v1702
  %v1719 = vadd.f32 %v1683, %v1703
  %v1720 = vadd.f32 %v1684, %v1704
  %1721 = vadd.xlane.f32.xlu0 %v1705
  %v1722 = vpop.xlane.xlu0 %1721
  %1723 = vadd.xlane.f32.xlu0 %v1706
  %v1724 = vpop.xlane.xlu0 %1723
  %1725 = vadd.xlane.f32.xlu0 %v1707
  %v1726 = vpop.xlane.xlu0 %1725
  %1727 = vadd.xlane.f32.xlu0 %v1708
  %v1728 = vpop.xlane.xlu0 %1727
  %1729 = vadd.xlane.f32.xlu0 %v1709
  %v1730 = vpop.xlane.xlu0 %1729
  %1731 = vadd.xlane.f32.xlu0 %v1710
  %v1732 = vpop.xlane.xlu0 %1731
  %1733 = vadd.xlane.f32.xlu0 %v1711
  %v1734 = vpop.xlane.xlu0 %1733
  %1735 = vadd.xlane.f32.xlu0 %v1712
  %v1736 = vpop.xlane.xlu0 %1735
  %1737 = vadd.xlane.f32.xlu0 %v1713
  %v1738 = vpop.xlane.xlu0 %1737
  %1739 = vadd.xlane.f32.xlu0 %v1714
  %v1740 = vpop.xlane.xlu0 %1739
  %1741 = vadd.xlane.f32.xlu0 %v1715
  %v1742 = vpop.xlane.xlu0 %1741
  %1743 = vadd.xlane.f32.xlu0 %v1716
  %v1744 = vpop.xlane.xlu0 %1743
  %1745 = vadd.xlane.f32.xlu0 %v1717
  %v1746 = vpop.xlane.xlu0 %1745
  %1747 = vadd.xlane.f32.xlu0 %v1718
  %v1748 = vpop.xlane.xlu0 %1747
  %1749 = vadd.xlane.f32.xlu0 %v1719
  %v1750 = vpop.xlane.xlu0 %1749
  %1751 = vadd.xlane.f32.xlu0 %v1720
  %v1752 = vpop.xlane.xlu0 %1751
  %v1753 = vlaneseq
  %v1754 = vshrl.u32 %v1753, 7
  %v1755 = vsub.s32 5, %v1754
  %v1756 = vrot.slane %v27, %v1755
  %v1757 = vadd.f32 %v1722, %v1756
  %v1758 = vadd.f32 %v1724, %v1756
  %v1759 = vadd.f32 %v1726, %v1756
  %v1760 = vadd.f32 %v1728, %v1756
  %v1761 = vadd.f32 %v1730, %v1756
  %v1762 = vadd.f32 %v1732, %v1756
  %v1763 = vadd.f32 %v1734, %v1756
  %v1764 = vadd.f32 %v1736, %v1756
  %v1765 = vadd.f32 %v1738, %v1756
  %v1766 = vadd.f32 %v1740, %v1756
  %v1767 = vadd.f32 %v1742, %v1756
  %v1768 = vadd.f32 %v1744, %v1756
  %v1769 = vadd.f32 %v1746, %v1756
  %v1770 = vadd.f32 %v1748, %v1756
  %v1771 = vadd.f32 %v1750, %v1756
  %v1772 = vadd.f32 %v1752, %v1756
  %v1773 = vxor.u32 %v1757, 2147483648
  %v1774 = vxor.u32 %v1758, 2147483648
  %v1775 = vxor.u32 %v1759, 2147483648
  %v1776 = vxor.u32 %v1760, 2147483648
  %v1777 = vxor.u32 %v1761, 2147483648
  %v1778 = vxor.u32 %v1762, 2147483648
  %v1779 = vxor.u32 %v1763, 2147483648
  %v1780 = vxor.u32 %v1764, 2147483648
  %v1781 = vxor.u32 %v1765, 2147483648
  %v1782 = vxor.u32 %v1766, 2147483648
  %v1783 = vxor.u32 %v1767, 2147483648
  %v1784 = vxor.u32 %v1768, 2147483648
  %v1785 = vxor.u32 %v1769, 2147483648
  %v1786 = vxor.u32 %v1770, 2147483648
  %v1787 = vxor.u32 %v1771, 2147483648
  %v1788 = vxor.u32 %v1772, 2147483648
  %v1789 = vmul.f32 %v1773, 1.442695
  %v1790 = vpow.pop %v1789
  %v1791 = vmul.f32 %v1774, 1.442695
  %v1792 = vpow.pop %v1791
  %v1793 = vmul.f32 %v1775, 1.442695
  %v1794 = vpow.pop %v1793
  %v1795 = vmul.f32 %v1776, 1.442695
  %v1796 = vpow.pop %v1795
  %v1797 = vmul.f32 %v1777, 1.442695
  %v1798 = vpow.pop %v1797
  %v1799 = vmul.f32 %v1778, 1.442695
  %v1800 = vpow.pop %v1799
  %v1801 = vmul.f32 %v1779, 1.442695
  %v1802 = vpow.pop %v1801
  %v1803 = vmul.f32 %v1780, 1.442695
  %v1804 = vpow.pop %v1803
  %v1805 = vmul.f32 %v1781, 1.442695
  %v1806 = vpow.pop %v1805
  %v1807 = vmul.f32 %v1782, 1.442695
  %v1808 = vpow.pop %v1807
  %v1809 = vmul.f32 %v1783, 1.442695
  %v1810 = vpow.pop %v1809
  %v1811 = vmul.f32 %v1784, 1.442695
  %v1812 = vpow.pop %v1811
  %v1813 = vmul.f32 %v1785, 1.442695
  %v1814 = vpow.pop %v1813
  %v1815 = vmul.f32 %v1786, 1.442695
  %v1816 = vpow.pop %v1815
  %v1817 = vmul.f32 %v1787, 1.442695
  %v1818 = vpow.pop %v1817
  %v1819 = vmul.f32 %v1788, 1.442695
  %v1820 = vpow.pop %v1819
  %v1821 = vadd.f32 %v1790, 1.0
  %v1822 = vadd.f32 %v1792, 1.0
  %v1823 = vadd.f32 %v1794, 1.0
  %v1824 = vadd.f32 %v1796, 1.0
  %v1825 = vadd.f32 %v1798, 1.0
  %v1826 = vadd.f32 %v1800, 1.0
  %v1827 = vadd.f32 %v1802, 1.0
  %v1828 = vadd.f32 %v1804, 1.0
  %v1829 = vadd.f32 %v1806, 1.0
  %v1830 = vadd.f32 %v1808, 1.0
  %v1831 = vadd.f32 %v1810, 1.0
  %v1832 = vadd.f32 %v1812, 1.0
  %v1833 = vadd.f32 %v1814, 1.0
  %v1834 = vadd.f32 %v1816, 1.0
  %v1835 = vadd.f32 %v1818, 1.0
  %v1836 = vadd.f32 %v1820, 1.0
  %v1837 = vrcp.pop %v1821
  %v1838 = vmul.f32 1.0, %v1837
  %v1839 = vrcp.pop %v1822
  %v1840 = vmul.f32 1.0, %v1839
  %v1841 = vrcp.pop %v1823
  %v1842 = vmul.f32 1.0, %v1841
  %v1843 = vrcp.pop %v1824
  %v1844 = vmul.f32 1.0, %v1843
  %v1845 = vrcp.pop %v1825
  %v1846 = vmul.f32 1.0, %v1845
  %v1847 = vrcp.pop %v1826
  %v1848 = vmul.f32 1.0, %v1847
  %v1849 = vrcp.pop %v1827
  %v1850 = vmul.f32 1.0, %v1849
  %v1851 = vrcp.pop %v1828
  %v1852 = vmul.f32 1.0, %v1851
  %v1853 = vrcp.pop %v1829
  %v1854 = vmul.f32 1.0, %v1853
  %v1855 = vrcp.pop %v1830
  %v1856 = vmul.f32 1.0, %v1855
  %v1857 = vrcp.pop %v1831
  %v1858 = vmul.f32 1.0, %v1857
  %v1859 = vrcp.pop %v1832
  %v1860 = vmul.f32 1.0, %v1859
  %v1861 = vrcp.pop %v1833
  %v1862 = vmul.f32 1.0, %v1861
  %v1863 = vrcp.pop %v1834
  %v1864 = vmul.f32 1.0, %v1863
  %v1865 = vrcp.pop %v1835
  %v1866 = vmul.f32 1.0, %v1865
  %v1867 = vrcp.pop %v1836
  %v1868 = vmul.f32 1.0, %v1867
  %vm1869 = vcmask 7168
  %1870 = vst.msk [vmem:[%s7] sm:$0xff] %vm1869, %v1838
  %1871 = vst.msk [vmem:[%s7 + $0x8] sm:$0xff] %vm1869, %v1840
  %1872 = vst.msk [vmem:[%s7 + $0x10] sm:$0xff] %vm1869, %v1842
  %1873 = vst.msk [vmem:[%s7 + $0x18] sm:$0xff] %vm1869, %v1844
  %1874 = vst.msk [vmem:[%s7 + $0x20] sm:$0xff] %vm1869, %v1846
  %1875 = vst.msk [vmem:[%s7 + $0x28] sm:$0xff] %vm1869, %v1848
  %1876 = vst.msk [vmem:[%s7 + $0x30] sm:$0xff] %vm1869, %v1850
  %1877 = vst.msk [vmem:[%s7 + $0x38] sm:$0xff] %vm1869, %v1852
  %1878 = vst.msk [vmem:[%s7 + $0x40] sm:$0xff] %vm1869, %v1854
  %1879 = vst.msk [vmem:[%s7 + $0x48] sm:$0xff] %vm1869, %v1856
  %1880 = vst.msk [vmem:[%s7 + $0x50] sm:$0xff] %vm1869, %v1858
  %1881 = vst.msk [vmem:[%s7 + $0x58] sm:$0xff] %vm1869, %v1860
  %1882 = vst.msk [vmem:[%s7 + $0x60] sm:$0xff] %vm1869, %v1862
  %1883 = vst.msk [vmem:[%s7 + $0x68] sm:$0xff] %vm1869, %v1864
  %1884 = vst.msk [vmem:[%s7 + $0x70] sm:$0xff] %vm1869, %v1866
  %1885 = vst.msk [vmem:[%s7 + $0x78] sm:$0xff] %vm1869, %v1868
  // Predicated region
  $region30: #{variable_predictor.1} parent=0 // pred_check
    _
  $region31: #{variable_predictor.1} parent=0 // pred_check_branch
    %1887 = sbr.rel (0) target = $region33
  $region32: #{variable_predictor.1} parent=0 // pred_region
    _
  $region33: #{variable_predictor.1} parent=0 // pred_fallthru
    _
  // Predicated region
  $region34: #{variable_predictor.1} parent=0 // pred_check
    _
  $region35: #{variable_predictor.1} parent=0 // pred_check_branch
    %1889 = sbr.rel (0) target = $region37
  $region36: #{variable_predictor.1} parent=0 // pred_region
    _
  $region37: #{variable_predictor.1} parent=0 // pred_fallthru
    _

</llo_original>
